<compile_context>
chip_gen: v5e
topology: v5e:2x2
jax: 0.10.0
libtpu: 0.0.40
codegen_flags: <defaults>
</compile_context>

<pallas_src>
import functools

import jax
import jax.numpy as jnp
from jax.experimental import pallas as pl
from jax.experimental.pallas import tpu as pltpu


def _round_up(x, m):
    return (x + m - 1) // m * m


def _flash_kernel(q_ref, k_ref, v_ref, o_ref, m_sc, l_sc, acc_sc, q_sc,
                  *, scale, n_pad_k):
    kv = pl.program_id(2)
    last_kv = pl.num_programs(2) - 1

    @pl.when(kv == 0)
    def _init():
        m_sc[...] = jnp.full_like(m_sc, -jnp.inf)
        l_sc[...] = jnp.zeros_like(l_sc)
        acc_sc[...] = jnp.zeros_like(acc_sc)
        # Q block is resident across the kv axis (index_map ignores kv):
        # fold the scale (in f32) and the matmul-dtype cast into it once.
        q_sc[...] = (q_ref[...].astype(jnp.float32)
                     * jnp.float32(scale)).astype(q_sc.dtype)

    # s = (scale * q) @ k^T : contraction over D of both operands (no explicit
    # K transpose), f32 MXU accumulation, operands in their native dtype.
    s = jax.lax.dot_general(
        q_sc[...], k_ref[...],
        dimension_numbers=(((1,), (1,)), ((), ())),
        preferred_element_type=jnp.float32)                      # (tq, tk)

    # Online softmax update (f32 throughout).
    m_prev = m_sc[...]                                           # (tq, 1)
    m_new = jnp.maximum(m_prev, jnp.max(s, axis=-1, keepdims=True))
    alpha = jnp.exp(m_prev - m_new)                              # (tq, 1)
    p = jnp.exp(s - m_new)                                       # (tq, tk)

    l_sc[...] = alpha * l_sc[...] + jnp.sum(p, axis=-1, keepdims=True)
    acc_sc[...] = alpha * acc_sc[...] + jnp.dot(
        p.astype(v_ref.dtype), v_ref[...],
        preferred_element_type=jnp.float32)
    m_sc[...] = m_new

    @pl.when(kv == last_kv)
    def _finalize():
        l = l_sc[...]
        if n_pad_k > 0:
            # Padded K rows are exact zeros -> their scores are exactly 0 and
            # each contributes exp(-m) to l (and nothing to acc, since padded
            # V rows are zeros).  Remove that with an O(tq) correction on the
            # last tile instead of masking (tq, tk) scores every kv step.
            l = l - jnp.float32(n_pad_k) * jnp.exp(-m_sc[...])
        inv_l = pl.reciprocal(l, approx=True)   # EUP; ~1e-3 rel err, OK here.
        o_ref[...] = (acc_sc[...] * inv_l).astype(o_ref.dtype)


def sdpa_pallas(query, key, value, *, tq=256, tk=256, use_bf16_matmul=False):
    B, Lq, D = query.shape
    Bk, Lk, Dk = key.shape
    Bv, Lkv, Dv = value.shape
    assert B == Bk == Bv and D == Dk and Lk == Lkv

    # scaled_qk = qk / (1.0 / Dv)  ==  qk * Dv
    scale = float(Dv)

    # Lane-dense feature dims (multiples of 128 lanes).
    d_p, dv_p = _round_up(D, 128), _round_up(Dv, 128)

    # Sequence tiles: at most the requested tile, at least (8)-sublane legal.
    tq_eff = min(tq, _round_up(Lq, 8))
    # v7x megacore: both TensorCores shard the parallel grid axes -> try to
    # keep B * (#q tiles) >= 2 so a core is never idle.
    if B * (_round_up(Lq, tq_eff) // tq_eff) < 2 and tq_eff > 8:
        half = _round_up(max(8, tq_eff // 2), 8)
        if B * (_round_up(Lq, half) // half) >= 2:
            tq_eff = half
    lq_p = _round_up(Lq, tq_eff)

    tk_eff = min(tk, _round_up(Lk, 8))
    lk_p = _round_up(Lk, tk_eff)
    n_pad_k = lk_p - Lk

    # Optional bf16 matmul path for f32 inputs (softmax math stays f32).
    if use_bf16_matmul and query.dtype == jnp.float32:
        mm_dtype = jnp.bfloat16
    else:
        mm_dtype = query.dtype

    def _pad(x, rows, cols):
        r, c = rows - x.shape[1], cols - x.shape[2]
        if r == 0 and c == 0:
            return x
        return jnp.pad(x, ((0, 0), (0, r), (0, c)))

    qp = _pad(query, lq_p, d_p)
    kp = _pad(key, lk_p, d_p).astype(mm_dtype)
    vp = _pad(value, lk_p, dv_p).astype(mm_dtype)

    grid = (B, lq_p // tq_eff, lk_p // tk_eff)
    kernel = functools.partial(_flash_kernel, scale=scale, n_pad_k=n_pad_k)

    # Honest VMEM budget: double-buffered blocks + scratch + headroom.
    out_elt = jnp.dtype(query.dtype).itemsize
    mm_elt = jnp.dtype(mm_dtype).itemsize
    q_b = tq_eff * d_p * qp.dtype.itemsize
    k_b = tk_eff * d_p * kp.dtype.itemsize
    v_b = tk_eff * dv_p * vp.dtype.itemsize
    o_b = tq_eff * dv_p * out_elt
    scratch_b = 4 * tq_eff * 2 + 4 * tq_eff * dv_p + mm_elt * tq_eff * d_p
    vmem_limit = int(min(2 * (q_b + k_b + v_b + o_b) + scratch_b + (8 << 20),
                         64 << 20))

    n_q_tiles = lq_p // tq_eff
    cost = pl.CostEstimate(
        flops=2 * B * lq_p * lk_p * (d_p + dv_p),
        transcendentals=B * lq_p * lk_p,
        bytes_accessed=int(qp.size) * qp.dtype.itemsize
        + n_q_tiles * (int(kp.size) * kp.dtype.itemsize
                       + int(vp.size) * vp.dtype.itemsize)
        + B * lq_p * dv_p * out_elt)

    out = pl.pallas_call(
        kernel,
        out_shape=jax.ShapeDtypeStruct((B, lq_p, dv_p), query.dtype),
        grid_spec=pltpu.PrefetchScalarGridSpec(
            num_scalar_prefetch=0,
            grid=grid,
            in_specs=[
                # Batch dim squeezed out of the kernel refs (None block dim).
                pl.BlockSpec((None, tq_eff, d_p), lambda b, i, j: (b, i, 0)),
                pl.BlockSpec((None, tk_eff, d_p), lambda b, i, j: (b, j, 0)),
                pl.BlockSpec((None, tk_eff, dv_p), lambda b, i, j: (b, j, 0)),
            ],
            out_specs=pl.BlockSpec((None, tq_eff, dv_p),
                                   lambda b, i, j: (b, i, 0)),
            scratch_shapes=[
                pltpu.VMEM((tq_eff, 1), jnp.float32),      # running max m
                pltpu.VMEM((tq_eff, 1), jnp.float32),      # running sum l
                pltpu.VMEM((tq_eff, dv_p), jnp.float32),   # output accumulator
                pltpu.VMEM((tq_eff, d_p), mm_dtype),       # scaled/cast Q
            ],
        ),
        compiler_params=pltpu.CompilerParams(
            dimension_semantics=("parallel", "parallel", "arbitrary"),
            vmem_limit_bytes=vmem_limit,
        ),
        cost_estimate=cost,
    )(qp, kp, vp)

    if out.shape != (B, Lq, Dv):
        out = out[:, :Lq, :Dv]
    return out


def sdpa_reference(query, key, value):
    inv_scale_factor = 1.0 / float(value.shape[-1])
    qk = jnp.einsum("bqd,bkd->bqk", query, key)
    scaled = qk / inv_scale_factor
    p = jax.nn.softmax(scaled, axis=-1)
    return jnp.einsum("bqk,bkv->bqv", p, value)


if __name__ == "__main__":
    rng = jax.random.PRNGKey(0)
    k_q, k_k, k_v, k_q2, k_k2, k_v2, k_w = jax.random.split(rng, 7)

    # --- Test 1: lane/tile-aligned shapes (single kv tile per Q tile). ---
    B, Lq, Lk, D, Dv = 2, 256, 256, 128, 128
    query = jax.random.normal(k_q, (B, Lq, D), dtype=jnp.float32)
    key = jax.random.normal(k_k, (B, Lk, D), dtype=jnp.float32)
    value = jax.random.normal(k_v, (B, Lk, Dv), dtype=jnp.float32)

    out = jax.block_until_ready(sdpa_pallas(query, key, value))
    ref = sdpa_reference(query, key, value)
    assert out.shape == (B, Lq, Dv)
    assert jnp.allclose(out, ref, atol=2e-2, rtol=2e-2)

    # --- Test 2: ragged shapes; sequences fit a single (8)-legal tile, so no
    # sequence padding, only feature-dim lane padding. ---
    B2, Lq2, Lk2, D2, Dv2 = 2, 40, 200, 96, 80
    query2 = jax.random.normal(k_q2, (B2, Lq2, D2), dtype=jnp.float32)
    key2 = jax.random.normal(k_k2, (B2, Lk2, D2), dtype=jnp.float32)
    value2 = jax.random.normal(k_v2, (B2, Lk2, Dv2), dtype=jnp.float32)

    out2 = jax.block_until_ready(sdpa_pallas(query2, key2, value2))
    ref2 = sdpa_reference(query2, key2, value2)
    assert out2.shape == (B2, Lq2, Dv2)
    assert jnp.allclose(out2, ref2, atol=2e-2, rtol=2e-2)

    # --- Test 3: small explicit tiles to exercise the multi-tile kv loop,
    # Lq/Lk padding, and the padded-key denominator correction. ---
    out3 = jax.block_until_ready(
        sdpa_pallas(query2, key2, value2, tq=32, tk=64))
    assert out3.shape == (B2, Lq2, Dv2)
    assert jnp.allclose(out3, ref2, atol=2e-2, rtol=2e-2)

    # Module parameter self.w = q.new_randn(v_dim, q_dim) — unused in forward,
    # initialized only for parity with __init__.
    w = jax.random.normal(k_w, (1, 1), dtype=jnp.float32)

    print("KERNEL_OK")
</pallas_src>

<mosaic_0001>
module attributes {stable_mosaic.version = 11 : i64} {
  func.func @_flash_kernel(%arg0: i32, %arg1: i32, %arg2: i32, %arg3: memref<1x256x128xf32, #tpu.memory_space<vmem>>, %arg4: memref<1x256x128xf32, #tpu.memory_space<vmem>>, %arg5: memref<1x256x128xf32, #tpu.memory_space<vmem>>, %arg6: memref<1x256x128xf32, #tpu.memory_space<vmem>>, %arg7: memref<256x1xf32, #tpu.memory_space<vmem>>, %arg8: memref<256x1xf32, #tpu.memory_space<vmem>>, %arg9: memref<256x128xf32, #tpu.memory_space<vmem>>, %arg10: memref<256x128xf32, #tpu.memory_space<vmem>>) attributes {dimension_semantics = [#tpu.dimension_semantics<parallel>, #tpu.dimension_semantics<parallel>, #tpu.dimension_semantics<arbitrary>], iteration_bounds = array<i64: 2, 1, 1>, scalar_prefetch = 0 : i64, scratch_operands = 4 : i64, tpu.core_type = #tpu.core_type<tc>, window_params = [{transform_indices = @transform_0, window_bounds = array<i64: 1, 256, 128>}, {transform_indices = @transform_1, window_bounds = array<i64: 1, 256, 128>}, {transform_indices = @transform_2, window_bounds = array<i64: 1, 256, 128>}, {transform_indices = @transform_3, window_bounds = array<i64: 1, 256, 128>}]} {
    %c0_i32 = arith.constant 0 : i32
    %0 = arith.cmpi eq, %arg2, %c0_i32 : i32
    %1 = arith.extui %0 : i1 to i32
    %c0_i32_0 = arith.constant 0 : i32
    %2 = arith.cmpi ne, %1, %c0_i32_0 : i32
    scf.if %2 {
      %cst_25 = arith.constant 0xFF800000 : f32
      %34 = vector.broadcast %cst_25 : f32 to vector<256x1xf32>
      %c0_26 = arith.constant 0 : index
      %c0_27 = arith.constant 0 : index
      %35 = vector.load %arg7[%c0_26, %c0_27] : memref<256x1xf32, #tpu.memory_space<vmem>>, vector<256x1xf32>
      tpu.vector_store %arg7[%c0_26, %c0_27], %34 {strides = array<i32>} : memref<256x1xf32, #tpu.memory_space<vmem>>, vector<256x1xf32>,
      %cst_28 = arith.constant 0.000000e+00 : f32
      %36 = vector.broadcast %cst_28 : f32 to vector<256x1xf32>
      %c0_29 = arith.constant 0 : index
      %c0_30 = arith.constant 0 : index
      %37 = vector.load %arg8[%c0_29, %c0_30] : memref<256x1xf32, #tpu.memory_space<vmem>>, vector<256x1xf32>
      tpu.vector_store %arg8[%c0_29, %c0_30], %36 {strides = array<i32>} : memref<256x1xf32, #tpu.memory_space<vmem>>, vector<256x1xf32>,
      %cst_31 = arith.constant 0.000000e+00 : f32
      %38 = vector.broadcast %cst_31 : f32 to vector<256x128xf32>
      %c0_32 = arith.constant 0 : index
      %c0_33 = arith.constant 0 : index
      %39 = vector.load %arg9[%c0_32, %c0_33] : memref<256x128xf32, #tpu.memory_space<vmem>>, vector<256x128xf32>
      tpu.vector_store %arg9[%c0_32, %c0_33], %38 {strides = array<i32>} : memref<256x128xf32, #tpu.memory_space<vmem>>, vector<256x128xf32>,
      %c0_34 = arith.constant 0 : index
      %c0_35 = arith.constant 0 : index
      %c0_36 = arith.constant 0 : index
      %40 = vector.load %arg3[%c0_34, %c0_35, %c0_36] : memref<1x256x128xf32, #tpu.memory_space<vmem>>, vector<1x256x128xf32>
      %41 = vector.shape_cast %40 : vector<1x256x128xf32> to vector<256x128xf32>
      %cst_37 = arith.constant 1.280000e+02 : f32
      %42 = vector.broadcast %cst_37 : f32 to vector<256x128xf32>
      %43 = arith.mulf %41, %42 : vector<256x128xf32>
      %c0_38 = arith.constant 0 : index
      %c0_39 = arith.constant 0 : index
      %44 = vector.load %arg10[%c0_38, %c0_39] : memref<256x128xf32, #tpu.memory_space<vmem>>, vector<256x128xf32>
      tpu.vector_store %arg10[%c0_38, %c0_39], %43 {strides = array<i32>} : memref<256x128xf32, #tpu.memory_space<vmem>>, vector<256x128xf32>,
    } else {
    }
    %c0 = arith.constant 0 : index
    %c0_1 = arith.constant 0 : index
    %3 = vector.load %arg10[%c0, %c0_1] : memref<256x128xf32, #tpu.memory_space<vmem>>, vector<256x128xf32>
    %c0_2 = arith.constant 0 : index
    %c0_3 = arith.constant 0 : index
    %c0_4 = arith.constant 0 : index
    %4 = vector.load %arg4[%c0_2, %c0_3, %c0_4] : memref<1x256x128xf32, #tpu.memory_space<vmem>>, vector<1x256x128xf32>
    %5 = vector.shape_cast %4 : vector<1x256x128xf32> to vector<256x128xf32>
    %cst = arith.constant dense<0.000000e+00> : vector<256x256xf32>
    %6 = tpu.matmul %3, %5, %cst {dimension_numbers = #tpu.dot_dimension_numbers<[1], [1], [0], [0], [0, 0, 1, 0], [], []>} : vector<256x128xf32>, vector<256x128xf32>, vector<256x256xf32> -> vector<256x256xf32>
    %c0_5 = arith.constant 0 : index
    %c0_6 = arith.constant 0 : index
    %7 = vector.load %arg7[%c0_5, %c0_6] : memref<256x1xf32, #tpu.memory_space<vmem>>, vector<256x1xf32>
    %cst_7 = arith.constant dense<0xFF800000> : vector<256xf32>
    %8 = vector.multi_reduction <maximumf>, %6, %cst_7 [1] : vector<256x256xf32> to vector<256xf32>
    %9 = vector.shape_cast %8 : vector<256xf32> to vector<256x1xf32>
    %10 = arith.maximumf %7, %9 : vector<256x1xf32>
    %11 = arith.subf %7, %10 : vector<256x1xf32>
    %12 = math.exp %11 : vector<256x1xf32>
    %13 = vector.broadcast %10 : vector<256x1xf32> to vector<256x256xf32>
    %14 = arith.subf %6, %13 : vector<256x256xf32>
    %15 = math.exp %14 : vector<256x256xf32>
    %c0_8 = arith.constant 0 : index
    %c0_9 = arith.constant 0 : index
    %16 = vector.load %arg8[%c0_8, %c0_9] : memref<256x1xf32, #tpu.memory_space<vmem>>, vector<256x1xf32>
    %17 = arith.mulf %12, %16 : vector<256x1xf32>
    %cst_10 = arith.constant dense<0.000000e+00> : vector<256xf32>
    %18 = vector.multi_reduction <add>, %15, %cst_10 [1] : vector<256x256xf32> to vector<256xf32>
    %19 = vector.shape_cast %18 : vector<256xf32> to vector<256x1xf32>
    %20 = arith.addf %17, %19 : vector<256x1xf32>
    %c0_11 = arith.constant 0 : index
    %c0_12 = arith.constant 0 : index
    %21 = vector.load %arg8[%c0_11, %c0_12] : memref<256x1xf32, #tpu.memory_space<vmem>>, vector<256x1xf32>
    tpu.vector_store %arg8[%c0_11, %c0_12], %20 {strides = array<i32>} : memref<256x1xf32, #tpu.memory_space<vmem>>, vector<256x1xf32>,
    %c0_13 = arith.constant 0 : index
    %c0_14 = arith.constant 0 : index
    %22 = vector.load %arg9[%c0_13, %c0_14] : memref<256x128xf32, #tpu.memory_space<vmem>>, vector<256x128xf32>
    %23 = vector.broadcast %12 : vector<256x1xf32> to vector<256x128xf32>
    %24 = arith.mulf %23, %22 : vector<256x128xf32>
    %c0_15 = arith.constant 0 : index
    %c0_16 = arith.constant 0 : index
    %c0_17 = arith.constant 0 : index
    %25 = vector.load %arg5[%c0_15, %c0_16, %c0_17] : memref<1x256x128xf32, #tpu.memory_space<vmem>>, vector<1x256x128xf32>
    %26 = vector.shape_cast %25 : vector<1x256x128xf32> to vector<256x128xf32>
    %cst_18 = arith.constant dense<0.000000e+00> : vector<256x128xf32>
    %27 = tpu.matmul %15, %26, %cst_18 {dimension_numbers = #tpu.dot_dimension_numbers<[1], [0], [0], [1], [0, 0, 1, 1], [], []>} : vector<256x256xf32>, vector<256x128xf32>, vector<256x128xf32> -> vector<256x128xf32>
    %28 = arith.addf %24, %27 : vector<256x128xf32>
    %c0_19 = arith.constant 0 : index
    %c0_20 = arith.constant 0 : index
    %29 = vector.load %arg9[%c0_19, %c0_20] : memref<256x128xf32, #tpu.memory_space<vmem>>, vector<256x128xf32>
    tpu.vector_store %arg9[%c0_19, %c0_20], %28 {strides = array<i32>} : memref<256x128xf32, #tpu.memory_space<vmem>>, vector<256x128xf32>,
    %c0_21 = arith.constant 0 : index
    %c0_22 = arith.constant 0 : index
    %30 = vector.load %arg7[%c0_21, %c0_22] : memref<256x1xf32, #tpu.memory_space<vmem>>, vector<256x1xf32>
    tpu.vector_store %arg7[%c0_21, %c0_22], %10 {strides = array<i32>} : memref<256x1xf32, #tpu.memory_space<vmem>>, vector<256x1xf32>,
    %c0_i32_23 = arith.constant 0 : i32
    %31 = arith.cmpi eq, %arg2, %c0_i32_23 : i32
    %32 = arith.extui %31 : i1 to i32
    %c0_i32_24 = arith.constant 0 : i32
    %33 = arith.cmpi ne, %32, %c0_i32_24 : i32
    scf.if %33 {
      %c0_25 = arith.constant 0 : index
      %c0_26 = arith.constant 0 : index
      %34 = vector.load %arg8[%c0_25, %c0_26] : memref<256x1xf32, #tpu.memory_space<vmem>>, vector<256x1xf32>
      %35 = tpu.reciprocal %34 {approx = true} : vector<256x1xf32> -> vector<256x1xf32>
      %c0_27 = arith.constant 0 : index
      %c0_28 = arith.constant 0 : index
      %36 = vector.load %arg9[%c0_27, %c0_28] : memref<256x128xf32, #tpu.memory_space<vmem>>, vector<256x128xf32>
      %37 = vector.broadcast %35 : vector<256x1xf32> to vector<256x128xf32>
      %38 = arith.mulf %36, %37 : vector<256x128xf32>
      %c0_29 = arith.constant 0 : index
      %c0_30 = arith.constant 0 : index
      %c0_31 = arith.constant 0 : index
      %39 = vector.load %arg6[%c0_29, %c0_30, %c0_31] : memref<1x256x128xf32, #tpu.memory_space<vmem>>, vector<1x256x128xf32>
      %40 = vector.shape_cast %39 : vector<1x256x128xf32> to vector<256x128xf32>
      %41 = vector.shape_cast %38 : vector<256x128xf32> to vector<1x256x128xf32>
      tpu.vector_store %arg6[%c0_29, %c0_30, %c0_31], %41 {strides = array<i32>} : memref<1x256x128xf32, #tpu.memory_space<vmem>>, vector<1x256x128xf32>,
    } else {
    }
    return
  }
  func.func @transform_0(%arg0: i32, %arg1: i32, %arg2: i32) -> (i32, i32, i32) {
    %c0_i32 = arith.constant 0 : i32
    %c0_i32_0 = arith.constant 0 : i32
    return %arg0, %arg1, %c0_i32 : i32, i32, i32
  }
  func.func @transform_1(%arg0: i32, %arg1: i32, %arg2: i32) -> (i32, i32, i32) {
    %c0_i32 = arith.constant 0 : i32
    %c0_i32_0 = arith.constant 0 : i32
    return %arg0, %arg2, %c0_i32 : i32, i32, i32
  }
  func.func @transform_2(%arg0: i32, %arg1: i32, %arg2: i32) -> (i32, i32, i32) {
    %c0_i32 = arith.constant 0 : i32
    %c0_i32_0 = arith.constant 0 : i32
    return %arg0, %arg2, %c0_i32 : i32, i32, i32
  }
  func.func @transform_3(%arg0: i32, %arg1: i32, %arg2: i32) -> (i32, i32, i32) {
    %c0_i32 = arith.constant 0 : i32
    %c0_i32_0 = arith.constant 0 : i32
    return %arg0, %arg1, %c0_i32 : i32, i32, i32
  }
}

</mosaic_0001>

<llo_original>
// kernel: tpu_custom_call.1
$region0: #{tpu_custom_call.1}
  #allocation0 [shape = 'u32[]', space=smem, size = 0x4, offset = 0x4, fixed_abs, tag = 'smem constant byte address 0x4 - core index']
  #allocation1 [shape = 'u32[72,128]{1,0:T(1,128)}', space=vmem, size = 0x9000, scoped, tag = 'internal scratch']
  #allocation2 [shape = 'f32[256,1]{1,0:T(8,128)}', space=vmem, size = 0x20000, scoped, tag = 'scratch operand']
  #allocation3 [shape = 'f32[256,1]{1,0:T(8,128)}', space=vmem, size = 0x20000, scoped, tag = 'scratch operand']
  #allocation4 [shape = 'f32[256,128]{1,0:T(8,128)}', space=vmem, size = 0x20000, scoped, tag = 'scratch operand']
  #allocation5 [shape = 'f32[256,128]{1,0:T(8,128)}', space=vmem, size = 0x20000, scoped, tag = 'scratch operand']
  %s0 = inlined_call_operand.hbm [shape: f32[2,256,128], index: 0, kind: input, shape index: {}]
  %s1 = inlined_call_operand.hbm [shape: f32[2,256,128], index: 1, kind: input, shape index: {}]
  %s2 = inlined_call_operand.hbm [shape: f32[2,256,128], index: 2, kind: input, shape index: {}]
  %s3 = inlined_call_operand.hbm [shape: f32[2,256,128], index: 3, kind: output, shape index: {}]
  %s4 = sld [smem:[#allocation0]]
  $region65: #{tpu_custom_call.1} parent=0
    _
  %s6 = ssub.s32 1, %s4
  %s7 = scalar_select 0, %s6, %s4
  $region1: #{tpu_custom_call.1} parent=0
    #allocation6 [shape = 'u8[262144]{0}', space=vmem, size = 0x40000, scoped, tag = 'input window, operand 0']
    #allocation7 [shape = 's32[2]{0}', space=sflag, size = 0x8, scoped, tag = 'scoped memory for tpu_custom_call.1']
    #allocation8 [shape = 's32[2]{0}', space=sflag, size = 0x8, scoped, tag = 'scoped memory for tpu_custom_call.1']
    #allocation9 [shape = 'u8[262144]{0}', space=vmem, size = 0x40000, scoped, tag = 'input window, operand 1']
    #allocation10 [shape = 's32[2]{0}', space=sflag, size = 0x8, scoped, tag = 'scoped memory for tpu_custom_call.1']
    #allocation11 [shape = 'u8[262144]{0}', space=vmem, size = 0x40000, scoped, tag = 'input window, operand 2']
    #allocation12 [shape = 'u8[262144]{0}', space=vmem, size = 0x40000, scoped, tag = 'output window, operand 0']
    %8 = vsyncpa [#allocation7], 0
    %s9 = scalar_lea.sflag [#allocation7], 1
    %10 = vsyncpa %s9, 0
    %11 = vsyncpa [#allocation10], 0
    %s12 = scalar_lea.sflag [#allocation10], 1
    %13 = vsyncpa %s12, 0
    %14 = vsyncpa [#allocation8], 0
    %s15 = scalar_lea.sflag [#allocation8], 1
    %16 = vsyncpa %s15, 0
    loop: start=0, step=1, limit=4
    $region2: #{tpu_custom_call.1} parent=1 // loop_pre_header
      _
    $region3: #{tpu_custom_call.1} parent=1 // loop_header
      %s18 = sphi 0, %s22
      %p19 = scmp.ge.s32.totalorder %s18, 4
      %s25 = sphi 0, %s44
      %s26 = sphi 0, %s40
      %s27 = sphi 0, %s36
      %s28 = sphi 0, %s25
      %s29 = sphi 0, %s26
      %s30 = sphi 0, %s27
      %s31 = sphi 0, %s28
      %s32 = sphi 0, %s29
      %s33 = sphi 0, %s30
      %s49 = sphi 0, %s51
      %s52 = sphi 0, %s49
      %s53 = sphi 0, %s52
      %s69 = sphi 0, %s53
      %s77 = sphi 0, %s79
      %s80 = sphi 0, %s77
      %s81 = sphi 0, %s80
      %s97 = sphi 0, %s81
      %s105 = sphi 0, %s107
      %s108 = sphi 0, %s105
      %s109 = sphi 0, %s108
      %s125 = sphi 0, %s109
      %s133 = sphi 0, %s135
      %s136 = sphi 0, %s133
      %s137 = sphi 0, %s136
      %s153 = sphi 0, %s137
    $region4: #{tpu_custom_call.1} parent=1 // loop_header_branch
      %21 = sbr.rel (%p19) target = $region8
    $region5: #{tpu_custom_call.1} parent=1 // loop_body
      %s23 = ssub.s32 %s18, 1
      %s24 = ssub.s32 %s18, 2
      %s34 = sadd.s32 1, %s27
      %p35 = scmp.ge.s32.totalorder %s34, 1
      %s36 = scalar_select %p35, 0, %s34
      %s37 = sadd.s32 1, %s26
      %s38 = scalar_select %p35, %s37, %s26
      %p39 = scmp.ge.s32.totalorder %s38, 1
      %s40 = scalar_select %p39, 0, %s38
      %s41 = sadd.s32 1, %s25
      %s42 = scalar_select %p39, %s41, %s25
      %p43 = scmp.ge.s32.totalorder %s42, 2
      %s44 = scalar_select %p43, 0, %s42
      %s45 = ssub.s32 %s25, %s44
      %s46 = ssub.s32 %s26, %s40
      %s47 = sor.u32 %s45, %s46
      %p48 = scmp.eq.s32.totalorder %s47, 0
      %s50 = sadd.s32 %s49, 1
      %s51 = scalar_select %p48, %s49, %s50
      %p54 = pneg %p48
      %p55 = scmp.eq.s32.totalorder %s18, 1
      %p56 = por %p54, %p55
      %p57 = scmp.ne.s32.totalorder %s49, %s52
      %p58 = scmp.eq.s32.totalorder %s18, 0
      %p59 = por %p57, %p58
      %p60 = scmp.ne.s32.totalorder %s49, %s52
      %p61 = scmp.eq.s32.totalorder %s23, 1
      %p62 = por %p60, %p61
      %p63 = scmp.ne.s32.totalorder %s52, %s53
      %p64 = scmp.eq.s32.totalorder %s23, 0
      %p65 = por %p63, %p64
      %p66 = scmp.ne.s32.totalorder %s52, %s53
      %p67 = scmp.eq.s32.totalorder %s24, 1
      %p68 = por %p66, %p67
      %p70 = scmp.ne.s32.totalorder %s53, %s69
      %p71 = scmp.eq.s32.totalorder %s24, 0
      %p72 = por %p70, %p71
      %s73 = ssub.s32 %s25, %s44
      %s74 = ssub.s32 %s27, %s36
      %s75 = sor.u32 %s73, %s74
      %p76 = scmp.eq.s32.totalorder %s75, 0
      %s78 = sadd.s32 %s77, 1
      %s79 = scalar_select %p76, %s77, %s78
      %p82 = pneg %p76
      %p83 = scmp.eq.s32.totalorder %s18, 1
      %p84 = por %p82, %p83
      %p85 = scmp.ne.s32.totalorder %s77, %s80
      %p86 = scmp.eq.s32.totalorder %s18, 0
      %p87 = por %p85, %p86
      %p88 = scmp.ne.s32.totalorder %s77, %s80
      %p89 = scmp.eq.s32.totalorder %s23, 1
      %p90 = por %p88, %p89
      %p91 = scmp.ne.s32.totalorder %s80, %s81
      %p92 = scmp.eq.s32.totalorder %s23, 0
      %p93 = por %p91, %p92
      %p94 = scmp.ne.s32.totalorder %s80, %s81
      %p95 = scmp.eq.s32.totalorder %s24, 1
      %p96 = por %p94, %p95
      %p98 = scmp.ne.s32.totalorder %s81, %s97
      %p99 = scmp.eq.s32.totalorder %s24, 0
      %p100 = por %p98, %p99
      %s101 = ssub.s32 %s25, %s44
      %s102 = ssub.s32 %s27, %s36
      %s103 = sor.u32 %s101, %s102
      %p104 = scmp.eq.s32.totalorder %s103, 0
      %s106 = sadd.s32 %s105, 1
      %s107 = scalar_select %p104, %s105, %s106
      %p110 = pneg %p104
      %p111 = scmp.eq.s32.totalorder %s18, 1
      %p112 = por %p110, %p111
      %p113 = scmp.ne.s32.totalorder %s105, %s108
      %p114 = scmp.eq.s32.totalorder %s18, 0
      %p115 = por %p113, %p114
      %p116 = scmp.ne.s32.totalorder %s105, %s108
      %p117 = scmp.eq.s32.totalorder %s23, 1
      %p118 = por %p116, %p117
      %p119 = scmp.ne.s32.totalorder %s108, %s109
      %p120 = scmp.eq.s32.totalorder %s23, 0
      %p121 = por %p119, %p120
      %p122 = scmp.ne.s32.totalorder %s108, %s109
      %p123 = scmp.eq.s32.totalorder %s24, 1
      %p124 = por %p122, %p123
      %p126 = scmp.ne.s32.totalorder %s109, %s125
      %p127 = scmp.eq.s32.totalorder %s24, 0
      %p128 = por %p126, %p127
      %s129 = ssub.s32 %s25, %s44
      %s130 = ssub.s32 %s26, %s40
      %s131 = sor.u32 %s129, %s130
      %p132 = scmp.eq.s32.totalorder %s131, 0
      %s134 = sadd.s32 %s133, 1
      %s135 = scalar_select %p132, %s133, %s134
      %p138 = pneg %p132
      %p139 = scmp.eq.s32.totalorder %s18, 1
      %p140 = por %p138, %p139
      %p141 = scmp.ne.s32.totalorder %s133, %s136
      %p142 = scmp.eq.s32.totalorder %s18, 0
      %p143 = por %p141, %p142
      %p144 = scmp.ne.s32.totalorder %s133, %s136
      %p145 = scmp.eq.s32.totalorder %s23, 1
      %p146 = por %p144, %p145
      %p147 = scmp.ne.s32.totalorder %s136, %s137
      %p148 = scmp.eq.s32.totalorder %s23, 0
      %p149 = por %p147, %p148
      %p150 = scmp.ne.s32.totalorder %s136, %s137
      %p151 = scmp.eq.s32.totalorder %s24, 1
      %p152 = por %p150, %p151
      %p154 = scmp.ne.s32.totalorder %s137, %s153
      %p155 = scmp.eq.s32.totalorder %s24, 0
      %p156 = por %p154, %p155
      %p157 = scmp.le.s32.totalorder 1, %s18
      %p158 = scmp.lt.s32.totalorder %s18, 3
      %p159 = pnand %p157, %p158
      %p160 = pneg %p159
      // Predicated region
      $region9: #{tpu_custom_call.1} parent=5 // pred_check
        _
      $region10: #{tpu_custom_call.1} parent=5 // pred_check_branch
        %162 = sbr.rel (%p159) target = $region12
      $region11: #{tpu_custom_call.1} parent=5 // pred_region
        %s163 = ssub.s32 %s18, 1
      $region12: #{tpu_custom_call.1} parent=5 // pred_fallthru
        _
      %p164 = scmp.lt.s32.totalorder %s18, 2
      // Predicated region
      $region13: #{tpu_custom_call.1} parent=5 // pred_check
        %p165 = pneg %p164
      $region14: #{tpu_custom_call.1} parent=5 // pred_check_branch
        %167 = sbr.rel (%p165) target = $region16
      $region15: #{tpu_custom_call.1} parent=5 // pred_region
        // Predicated region
        $region17: #{tpu_custom_call.1} parent=15 // pred_check
          %p168 = pneg %p59
        $region18: #{tpu_custom_call.1} parent=15 // pred_check_branch
          %170 = sbr.rel (%p168) target = $region20
        $region19: #{tpu_custom_call.1} parent=15 // pred_region
          %s171 = sand.u32 %s49, 1
          %s172 = scalar_lea.sflag [#allocation7], %s171
          %s173 = sand.u32 %s49, 1
          %s174 = smul.addr %s173, 256
          %s175 = scalar_lea.vmem [#allocation6], %s174
          %s176 = smul.u32 32, %s26
          %178 = vsyncadd %s172, 0
          %s179 = smul.addr %s25, 32
          %s180 = sadd.s32 %s176, %s179
          %s181 = smul.addr %s180, 8
          %s182 = scalar_lea.hbm %s0, %s181
          %s183 = sshll.u32 %s182, 4
          %s184 = int_to_ptr.hbm [resolvable:$true] %s183
          %s185 = sshll.u32 %s175, 4
          %s186 = int_to_ptr.vmem [resolvable:$true] %s185
          %191 = dma.hbm_to_vmem [thread:$0]  %s184, 4096, %s186, %s172, 128, 128, 8
        $region20: #{tpu_custom_call.1} parent=15 // pred_fallthru
          _
        // Predicated region
        $region21: #{tpu_custom_call.1} parent=15 // pred_check
          %p192 = pneg %p87
        $region22: #{tpu_custom_call.1} parent=15 // pred_check_branch
          %194 = sbr.rel (%p192) target = $region24
        $region23: #{tpu_custom_call.1} parent=15 // pred_region
          %s195 = sand.u32 %s18, 1
          %s196 = scalar_lea.sflag [#allocation10], %s195
          %s197 = sand.u32 %s77, 1
          %s198 = smul.addr %s197, 256
          %s199 = scalar_lea.vmem [#allocation9], %s198
          %s200 = smul.u32 32, %s27
          %202 = vsyncadd %s196, 0
          %s203 = smul.addr %s25, 32
          %s204 = sadd.s32 %s200, %s203
          %s205 = smul.addr %s204, 8
          %s206 = scalar_lea.hbm %s1, %s205
          %s207 = sshll.u32 %s206, 4
          %s208 = int_to_ptr.hbm [resolvable:$true] %s207
          %s209 = sshll.u32 %s199, 4
          %s210 = int_to_ptr.vmem [resolvable:$true] %s209
          %215 = dma.hbm_to_vmem [thread:$0]  %s208, 4096, %s210, %s196, 128, 128, 8
        $region24: #{tpu_custom_call.1} parent=15 // pred_fallthru
          _
        // Predicated region
        $region25: #{tpu_custom_call.1} parent=15 // pred_check
          %p216 = pneg %p115
        $region26: #{tpu_custom_call.1} parent=15 // pred_check_branch
          %218 = sbr.rel (%p216) target = $region28
        $region27: #{tpu_custom_call.1} parent=15 // pred_region
          %s219 = sand.u32 %s18, 1
          %s220 = scalar_lea.sflag [#allocation10], %s219
          %s221 = sand.u32 %s105, 1
          %s222 = smul.addr %s221, 256
          %s223 = scalar_lea.vmem [#allocation11], %s222
          %s224 = smul.u32 32, %s27
          %226 = vsyncadd %s220, 0
          %s227 = smul.addr %s25, 32
          %s228 = sadd.s32 %s224, %s227
          %s229 = smul.addr %s228, 8
          %s230 = scalar_lea.hbm %s2, %s229
          %s231 = sshll.u32 %s230, 4
          %s232 = int_to_ptr.hbm [resolvable:$true] %s231
          %s233 = sshll.u32 %s223, 4
          %s234 = int_to_ptr.vmem [resolvable:$true] %s233
          %239 = dma.hbm_to_vmem [thread:$0]  %s232, 4096, %s234, %s220, 128, 128, 8
        $region28: #{tpu_custom_call.1} parent=15 // pred_fallthru
          _
      $region16: #{tpu_custom_call.1} parent=5 // pred_fallthru
        _
      %p240 = scmp.le.s32.totalorder 1, %s18
      %p241 = scmp.lt.s32.totalorder %s18, 3
      %p242 = pnand %p240, %p241
      %p243 = pneg %p242
      // Predicated region
      $region29: #{tpu_custom_call.1} parent=5 // pred_check
        _
      $region30: #{tpu_custom_call.1} parent=5 // pred_check_branch
        %245 = sbr.rel (%p242) target = $region32
      $region31: #{tpu_custom_call.1} parent=5 // pred_region
        %s246 = ssub.s32 %s18, 1
        %s247 = sand.u32 %s52, 1
        %s248 = scalar_lea.sflag [#allocation7], %s247
        %s249 = sand.u32 %s52, 1
        %s250 = smul.addr %s249, 256
        %s251 = scalar_lea.vmem [#allocation6], %s250
        // Predicated region
        $region33: #{tpu_custom_call.1} parent=31 // pred_check
          %p252 = pneg %p65
        $region34: #{tpu_custom_call.1} parent=31 // pred_check_branch
          %254 = sbr.rel (%p252) target = $region36
        $region35: #{tpu_custom_call.1} parent=31 // pred_region
          %256 = dma.done %s248, 4096
        $region36: #{tpu_custom_call.1} parent=31 // pred_fallthru
          _
        %s257 = sand.u32 %s23, 1
        %s258 = scalar_lea.sflag [#allocation10], %s257
        %s259 = sand.u32 %s80, 1
        %s260 = smul.addr %s259, 256
        %s261 = scalar_lea.vmem [#allocation9], %s260
        // Predicated region
        $region37: #{tpu_custom_call.1} parent=31 // pred_check
          %p262 = pneg %p93
        $region38: #{tpu_custom_call.1} parent=31 // pred_check_branch
          %264 = sbr.rel (%p262) target = $region40
        $region39: #{tpu_custom_call.1} parent=31 // pred_region
          %266 = dma.done %s258, 4096
        $region40: #{tpu_custom_call.1} parent=31 // pred_fallthru
          _
        %s267 = sand.u32 %s23, 1
        %s268 = scalar_lea.sflag [#allocation10], %s267
        %s269 = sand.u32 %s108, 1
        %s270 = smul.addr %s269, 256
        %s271 = scalar_lea.vmem [#allocation11], %s270
        // Predicated region
        $region41: #{tpu_custom_call.1} parent=31 // pred_check
          %p272 = pneg %p121
        $region42: #{tpu_custom_call.1} parent=31 // pred_check_branch
          %274 = sbr.rel (%p272) target = $region44
        $region43: #{tpu_custom_call.1} parent=31 // pred_region
          %276 = dma.done %s268, 4096
        $region44: #{tpu_custom_call.1} parent=31 // pred_fallthru
          _
        %s277 = sand.u32 %s52, 1
        %s278 = scalar_lea.sflag [#allocation7], %s277
        %s279 = sand.u32 %s52, 1
        %s280 = smul.addr %s279, 256
        %s281 = scalar_lea.vmem [#allocation6], %s280
        %p282 = pneg %p65
        %p283 = pneg %p62
        %s284 = sand.u32 %s23, 1
        %s285 = scalar_lea.sflag [#allocation10], %s284
        %s286 = sand.u32 %s80, 1
        %s287 = smul.addr %s286, 256
        %s288 = scalar_lea.vmem [#allocation9], %s287
        %p289 = pneg %p93
        %p290 = pneg %p90
        %s291 = sand.u32 %s23, 1
        %s292 = scalar_lea.sflag [#allocation10], %s291
        %s293 = sand.u32 %s108, 1
        %s294 = smul.addr %s293, 256
        %s295 = scalar_lea.vmem [#allocation11], %s294
        %p296 = pneg %p121
        %p297 = pneg %p118
        %p298 = pneg %p149
        %p299 = pneg %p146
        %s300 = sand.u32 %s136, 1
        %s301 = scalar_lea.sflag [#allocation8], %s300
        %s302 = sand.u32 %s136, 1
        %s303 = smul.addr %s302, 256
        %s304 = scalar_lea.vmem [#allocation12], %s303
        %s305 = smul.u32 32, %s29
        %s306 = smul.u32 32, %s30
        %s307 = smul.u32 32, %s30
        %s308 = smul.u32 32, %s29
        %p309 = scmp.eq.s32.totalorder %s30, 0
        // Predicated region
        $region45: #{tpu_custom_call.1} parent=31 // pred_check
          %p310 = pneg %p309
        $region46: #{tpu_custom_call.1} parent=31 // pred_check_branch
          %312 = sbr.rel (%p310) target = $region48
        $region47: #{tpu_custom_call.1} parent=31 // pred_region
          %vm313 = vcmask 7168
          %314 = vst.msk [vmem:[#allocation2] sm:$0xff] %vm313, -inf
          %315 = vst.msk [vmem:[#allocation2 + $0x8] sm:$0xff] %vm313, -inf
          %316 = vst.msk [vmem:[#allocation2 + $0x10] sm:$0xff] %vm313, -inf
          %317 = vst.msk [vmem:[#allocation2 + $0x18] sm:$0xff] %vm313, -inf
          %318 = vst.msk [vmem:[#allocation2 + $0x20] sm:$0xff] %vm313, -inf
          %319 = vst.msk [vmem:[#allocation2 + $0x28] sm:$0xff] %vm313, -inf
          %320 = vst.msk [vmem:[#allocation2 + $0x30] sm:$0xff] %vm313, -inf
          %321 = vst.msk [vmem:[#allocation2 + $0x38] sm:$0xff] %vm313, -inf
          %322 = vst.msk [vmem:[#allocation2 + $0x40] sm:$0xff] %vm313, -inf
          %323 = vst.msk [vmem:[#allocation2 + $0x48] sm:$0xff] %vm313, -inf
          %324 = vst.msk [vmem:[#allocation2 + $0x50] sm:$0xff] %vm313, -inf
          %325 = vst.msk [vmem:[#allocation2 + $0x58] sm:$0xff] %vm313, -inf
          %326 = vst.msk [vmem:[#allocation2 + $0x60] sm:$0xff] %vm313, -inf
          %327 = vst.msk [vmem:[#allocation2 + $0x68] sm:$0xff] %vm313, -inf
          %328 = vst.msk [vmem:[#allocation2 + $0x70] sm:$0xff] %vm313, -inf
          %329 = vst.msk [vmem:[#allocation2 + $0x78] sm:$0xff] %vm313, -inf
          %330 = vst.msk [vmem:[#allocation2 + $0x80] sm:$0xff] %vm313, -inf
          %331 = vst.msk [vmem:[#allocation2 + $0x88] sm:$0xff] %vm313, -inf
          %332 = vst.msk [vmem:[#allocation2 + $0x90] sm:$0xff] %vm313, -inf
          %333 = vst.msk [vmem:[#allocation2 + $0x98] sm:$0xff] %vm313, -inf
          %334 = vst.msk [vmem:[#allocation2 + $0xa0] sm:$0xff] %vm313, -inf
          %335 = vst.msk [vmem:[#allocation2 + $0xa8] sm:$0xff] %vm313, -inf
          %336 = vst.msk [vmem:[#allocation2 + $0xb0] sm:$0xff] %vm313, -inf
          %337 = vst.msk [vmem:[#allocation2 + $0xb8] sm:$0xff] %vm313, -inf
          %338 = vst.msk [vmem:[#allocation2 + $0xc0] sm:$0xff] %vm313, -inf
          %339 = vst.msk [vmem:[#allocation2 + $0xc8] sm:$0xff] %vm313, -inf
          %340 = vst.msk [vmem:[#allocation2 + $0xd0] sm:$0xff] %vm313, -inf
          %341 = vst.msk [vmem:[#allocation2 + $0xd8] sm:$0xff] %vm313, -inf
          %342 = vst.msk [vmem:[#allocation2 + $0xe0] sm:$0xff] %vm313, -inf
          %343 = vst.msk [vmem:[#allocation2 + $0xe8] sm:$0xff] %vm313, -inf
          %344 = vst.msk [vmem:[#allocation2 + $0xf0] sm:$0xff] %vm313, -inf
          %345 = vst.msk [vmem:[#allocation2 + $0xf8] sm:$0xff] %vm313, -inf
          %346 = vst.msk [vmem:[#allocation3] sm:$0xff] %vm313, 0.0
          %347 = vst.msk [vmem:[#allocation3 + $0x8] sm:$0xff] %vm313, 0.0
          %348 = vst.msk [vmem:[#allocation3 + $0x10] sm:$0xff] %vm313, 0.0
          %349 = vst.msk [vmem:[#allocation3 + $0x18] sm:$0xff] %vm313, 0.0
          %350 = vst.msk [vmem:[#allocation3 + $0x20] sm:$0xff] %vm313, 0.0
          %351 = vst.msk [vmem:[#allocation3 + $0x28] sm:$0xff] %vm313, 0.0
          %352 = vst.msk [vmem:[#allocation3 + $0x30] sm:$0xff] %vm313, 0.0
          %353 = vst.msk [vmem:[#allocation3 + $0x38] sm:$0xff] %vm313, 0.0
          %354 = vst.msk [vmem:[#allocation3 + $0x40] sm:$0xff] %vm313, 0.0
          %355 = vst.msk [vmem:[#allocation3 + $0x48] sm:$0xff] %vm313, 0.0
          %356 = vst.msk [vmem:[#allocation3 + $0x50] sm:$0xff] %vm313, 0.0
          %357 = vst.msk [vmem:[#allocation3 + $0x58] sm:$0xff] %vm313, 0.0
          %358 = vst.msk [vmem:[#allocation3 + $0x60] sm:$0xff] %vm313, 0.0
          %359 = vst.msk [vmem:[#allocation3 + $0x68] sm:$0xff] %vm313, 0.0
          %360 = vst.msk [vmem:[#allocation3 + $0x70] sm:$0xff] %vm313, 0.0
          %361 = vst.msk [vmem:[#allocation3 + $0x78] sm:$0xff] %vm313, 0.0
          %362 = vst.msk [vmem:[#allocation3 + $0x80] sm:$0xff] %vm313, 0.0
          %363 = vst.msk [vmem:[#allocation3 + $0x88] sm:$0xff] %vm313, 0.0
          %364 = vst.msk [vmem:[#allocation3 + $0x90] sm:$0xff] %vm313, 0.0
          %365 = vst.msk [vmem:[#allocation3 + $0x98] sm:$0xff] %vm313, 0.0
          %366 = vst.msk [vmem:[#allocation3 + $0xa0] sm:$0xff] %vm313, 0.0
          %367 = vst.msk [vmem:[#allocation3 + $0xa8] sm:$0xff] %vm313, 0.0
          %368 = vst.msk [vmem:[#allocation3 + $0xb0] sm:$0xff] %vm313, 0.0
          %369 = vst.msk [vmem:[#allocation3 + $0xb8] sm:$0xff] %vm313, 0.0
          %370 = vst.msk [vmem:[#allocation3 + $0xc0] sm:$0xff] %vm313, 0.0
          %371 = vst.msk [vmem:[#allocation3 + $0xc8] sm:$0xff] %vm313, 0.0
          %372 = vst.msk [vmem:[#allocation3 + $0xd0] sm:$0xff] %vm313, 0.0
          %373 = vst.msk [vmem:[#allocation3 + $0xd8] sm:$0xff] %vm313, 0.0
          %374 = vst.msk [vmem:[#allocation3 + $0xe0] sm:$0xff] %vm313, 0.0
          %375 = vst.msk [vmem:[#allocation3 + $0xe8] sm:$0xff] %vm313, 0.0
          %376 = vst.msk [vmem:[#allocation3 + $0xf0] sm:$0xff] %vm313, 0.0
          %377 = vst.msk [vmem:[#allocation3 + $0xf8] sm:$0xff] %vm313, 0.0
          %378 = vst [vmem:[#allocation4] sm:$0xff] 0.0
          %379 = vst [vmem:[#allocation4 + $0x8] sm:$0xff] 0.0
          %380 = vst [vmem:[#allocation4 + $0x10] sm:$0xff] 0.0
          %381 = vst [vmem:[#allocation4 + $0x18] sm:$0xff] 0.0
          %382 = vst [vmem:[#allocation4 + $0x20] sm:$0xff] 0.0
          %383 = vst [vmem:[#allocation4 + $0x28] sm:$0xff] 0.0
          %384 = vst [vmem:[#allocation4 + $0x30] sm:$0xff] 0.0
          %385 = vst [vmem:[#allocation4 + $0x38] sm:$0xff] 0.0
          %386 = vst [vmem:[#allocation4 + $0x40] sm:$0xff] 0.0
          %387 = vst [vmem:[#allocation4 + $0x48] sm:$0xff] 0.0
          %388 = vst [vmem:[#allocation4 + $0x50] sm:$0xff] 0.0
          %389 = vst [vmem:[#allocation4 + $0x58] sm:$0xff] 0.0
          %390 = vst [vmem:[#allocation4 + $0x60] sm:$0xff] 0.0
          %391 = vst [vmem:[#allocation4 + $0x68] sm:$0xff] 0.0
          %392 = vst [vmem:[#allocation4 + $0x70] sm:$0xff] 0.0
          %393 = vst [vmem:[#allocation4 + $0x78] sm:$0xff] 0.0
          %394 = vst [vmem:[#allocation4 + $0x80] sm:$0xff] 0.0
          %395 = vst [vmem:[#allocation4 + $0x88] sm:$0xff] 0.0
          %396 = vst [vmem:[#allocation4 + $0x90] sm:$0xff] 0.0
          %397 = vst [vmem:[#allocation4 + $0x98] sm:$0xff] 0.0
          %398 = vst [vmem:[#allocation4 + $0xa0] sm:$0xff] 0.0
          %399 = vst [vmem:[#allocation4 + $0xa8] sm:$0xff] 0.0
          %400 = vst [vmem:[#allocation4 + $0xb0] sm:$0xff] 0.0
          %401 = vst [vmem:[#allocation4 + $0xb8] sm:$0xff] 0.0
          %402 = vst [vmem:[#allocation4 + $0xc0] sm:$0xff] 0.0
          %403 = vst [vmem:[#allocation4 + $0xc8] sm:$0xff] 0.0
          %404 = vst [vmem:[#allocation4 + $0xd0] sm:$0xff] 0.0
          %405 = vst [vmem:[#allocation4 + $0xd8] sm:$0xff] 0.0
          %406 = vst [vmem:[#allocation4 + $0xe0] sm:$0xff] 0.0
          %407 = vst [vmem:[#allocation4 + $0xe8] sm:$0xff] 0.0
          %408 = vst [vmem:[#allocation4 + $0xf0] sm:$0xff] 0.0
          %409 = vst [vmem:[#allocation4 + $0xf8] sm:$0xff] 0.0
          %v410 = vld [vmem:[%s251] sm:$0xff]
          %v411 = vld [vmem:[%s251 + $0x8] sm:$0xff]
          %v412 = vld [vmem:[%s251 + $0x10] sm:$0xff]
          %v413 = vld [vmem:[%s251 + $0x18] sm:$0xff]
          %v414 = vld [vmem:[%s251 + $0x20] sm:$0xff]
          %v415 = vld [vmem:[%s251 + $0x28] sm:$0xff]
          %v416 = vld [vmem:[%s251 + $0x30] sm:$0xff]
          %v417 = vld [vmem:[%s251 + $0x38] sm:$0xff]
          %v418 = vld [vmem:[%s251 + $0x40] sm:$0xff]
          %v419 = vld [vmem:[%s251 + $0x48] sm:$0xff]
          %v420 = vld [vmem:[%s251 + $0x50] sm:$0xff]
          %v421 = vld [vmem:[%s251 + $0x58] sm:$0xff]
          %v422 = vld [vmem:[%s251 + $0x60] sm:$0xff]
          %v423 = vld [vmem:[%s251 + $0x68] sm:$0xff]
          %v424 = vld [vmem:[%s251 + $0x70] sm:$0xff]
          %v425 = vld [vmem:[%s251 + $0x78] sm:$0xff]
          %v426 = vld [vmem:[%s251 + $0x80] sm:$0xff]
          %v427 = vld [vmem:[%s251 + $0x88] sm:$0xff]
          %v428 = vld [vmem:[%s251 + $0x90] sm:$0xff]
          %v429 = vld [vmem:[%s251 + $0x98] sm:$0xff]
          %v430 = vld [vmem:[%s251 + $0xa0] sm:$0xff]
          %v431 = vld [vmem:[%s251 + $0xa8] sm:$0xff]
          %v432 = vld [vmem:[%s251 + $0xb0] sm:$0xff]
          %v433 = vld [vmem:[%s251 + $0xb8] sm:$0xff]
          %v434 = vld [vmem:[%s251 + $0xc0] sm:$0xff]
          %v435 = vld [vmem:[%s251 + $0xc8] sm:$0xff]
          %v436 = vld [vmem:[%s251 + $0xd0] sm:$0xff]
          %v437 = vld [vmem:[%s251 + $0xd8] sm:$0xff]
          %v438 = vld [vmem:[%s251 + $0xe0] sm:$0xff]
          %v439 = vld [vmem:[%s251 + $0xe8] sm:$0xff]
          %v440 = vld [vmem:[%s251 + $0xf0] sm:$0xff]
          %v441 = vld [vmem:[%s251 + $0xf8] sm:$0xff]
          %v442 = vmul.f32 %v410, 128.0
          %v443 = vmul.f32 %v411, 128.0
          %v444 = vmul.f32 %v412, 128.0
          %v445 = vmul.f32 %v413, 128.0
          %v446 = vmul.f32 %v414, 128.0
          %v447 = vmul.f32 %v415, 128.0
          %v448 = vmul.f32 %v416, 128.0
          %v449 = vmul.f32 %v417, 128.0
          %v450 = vmul.f32 %v418, 128.0
          %v451 = vmul.f32 %v419, 128.0
          %v452 = vmul.f32 %v420, 128.0
          %v453 = vmul.f32 %v421, 128.0
          %v454 = vmul.f32 %v422, 128.0
          %v455 = vmul.f32 %v423, 128.0
          %v456 = vmul.f32 %v424, 128.0
          %v457 = vmul.f32 %v425, 128.0
          %v458 = vmul.f32 %v426, 128.0
          %v459 = vmul.f32 %v427, 128.0
          %v460 = vmul.f32 %v428, 128.0
          %v461 = vmul.f32 %v429, 128.0
          %v462 = vmul.f32 %v430, 128.0
          %v463 = vmul.f32 %v431, 128.0
          %v464 = vmul.f32 %v432, 128.0
          %v465 = vmul.f32 %v433, 128.0
          %v466 = vmul.f32 %v434, 128.0
          %v467 = vmul.f32 %v435, 128.0
          %v468 = vmul.f32 %v436, 128.0
          %v469 = vmul.f32 %v437, 128.0
          %v470 = vmul.f32 %v438, 128.0
          %v471 = vmul.f32 %v439, 128.0
          %v472 = vmul.f32 %v440, 128.0
          %v473 = vmul.f32 %v441, 128.0
          %474 = vst [vmem:[#allocation5] sm:$0xff] %v442
          %475 = vst [vmem:[#allocation5 + $0x8] sm:$0xff] %v443
          %476 = vst [vmem:[#allocation5 + $0x10] sm:$0xff] %v444
          %477 = vst [vmem:[#allocation5 + $0x18] sm:$0xff] %v445
          %478 = vst [vmem:[#allocation5 + $0x20] sm:$0xff] %v446
          %479 = vst [vmem:[#allocation5 + $0x28] sm:$0xff] %v447
          %480 = vst [vmem:[#allocation5 + $0x30] sm:$0xff] %v448
          %481 = vst [vmem:[#allocation5 + $0x38] sm:$0xff] %v449
          %482 = vst [vmem:[#allocation5 + $0x40] sm:$0xff] %v450
          %483 = vst [vmem:[#allocation5 + $0x48] sm:$0xff] %v451
          %484 = vst [vmem:[#allocation5 + $0x50] sm:$0xff] %v452
          %485 = vst [vmem:[#allocation5 + $0x58] sm:$0xff] %v453
          %486 = vst [vmem:[#allocation5 + $0x60] sm:$0xff] %v454
          %487 = vst [vmem:[#allocation5 + $0x68] sm:$0xff] %v455
          %488 = vst [vmem:[#allocation5 + $0x70] sm:$0xff] %v456
          %489 = vst [vmem:[#allocation5 + $0x78] sm:$0xff] %v457
          %490 = vst [vmem:[#allocation5 + $0x80] sm:$0xff] %v458
          %491 = vst [vmem:[#allocation5 + $0x88] sm:$0xff] %v459
          %492 = vst [vmem:[#allocation5 + $0x90] sm:$0xff] %v460
          %493 = vst [vmem:[#allocation5 + $0x98] sm:$0xff] %v461
          %494 = vst [vmem:[#allocation5 + $0xa0] sm:$0xff] %v462
          %495 = vst [vmem:[#allocation5 + $0xa8] sm:$0xff] %v463
          %496 = vst [vmem:[#allocation5 + $0xb0] sm:$0xff] %v464
          %497 = vst [vmem:[#allocation5 + $0xb8] sm:$0xff] %v465
          %498 = vst [vmem:[#allocation5 + $0xc0] sm:$0xff] %v466
          %499 = vst [vmem:[#allocation5 + $0xc8] sm:$0xff] %v467
          %500 = vst [vmem:[#allocation5 + $0xd0] sm:$0xff] %v468
          %501 = vst [vmem:[#allocation5 + $0xd8] sm:$0xff] %v469
          %502 = vst [vmem:[#allocation5 + $0xe0] sm:$0xff] %v470
          %503 = vst [vmem:[#allocation5 + $0xe8] sm:$0xff] %v471
          %504 = vst [vmem:[#allocation5 + $0xf0] sm:$0xff] %v472
          %505 = vst [vmem:[#allocation5 + $0xf8] sm:$0xff] %v473
        $region48: #{tpu_custom_call.1} parent=31 // pred_fallthru
          _
        %v506 = vld [vmem:[#allocation5] sm:$0xff]
        %v507 = vld [vmem:[#allocation5 + $0x8] sm:$0xff]
        %v508 = vld [vmem:[#allocation5 + $0x10] sm:$0xff]
        %v509 = vld [vmem:[#allocation5 + $0x18] sm:$0xff]
        %v510 = vld [vmem:[#allocation5 + $0x20] sm:$0xff]
        %v511 = vld [vmem:[#allocation5 + $0x28] sm:$0xff]
        %v512 = vld [vmem:[#allocation5 + $0x30] sm:$0xff]
        %v513 = vld [vmem:[#allocation5 + $0x38] sm:$0xff]
        %v514 = vld [vmem:[#allocation5 + $0x40] sm:$0xff]
        %v515 = vld [vmem:[#allocation5 + $0x48] sm:$0xff]
        %v516 = vld [vmem:[#allocation5 + $0x50] sm:$0xff]
        %v517 = vld [vmem:[#allocation5 + $0x58] sm:$0xff]
        %v518 = vld [vmem:[#allocation5 + $0x60] sm:$0xff]
        %v519 = vld [vmem:[#allocation5 + $0x68] sm:$0xff]
        %v520 = vld [vmem:[#allocation5 + $0x70] sm:$0xff]
        %v521 = vld [vmem:[#allocation5 + $0x78] sm:$0xff]
        %v522 = vld [vmem:[#allocation5 + $0x80] sm:$0xff]
        %v523 = vld [vmem:[#allocation5 + $0x88] sm:$0xff]
        %v524 = vld [vmem:[#allocation5 + $0x90] sm:$0xff]
        %v525 = vld [vmem:[#allocation5 + $0x98] sm:$0xff]
        %v526 = vld [vmem:[#allocation5 + $0xa0] sm:$0xff]
        %v527 = vld [vmem:[#allocation5 + $0xa8] sm:$0xff]
        %v528 = vld [vmem:[#allocation5 + $0xb0] sm:$0xff]
        %v529 = vld [vmem:[#allocation5 + $0xb8] sm:$0xff]
        %v530 = vld [vmem:[#allocation5 + $0xc0] sm:$0xff]
        %v531 = vld [vmem:[#allocation5 + $0xc8] sm:$0xff]
        %v532 = vld [vmem:[#allocation5 + $0xd0] sm:$0xff]
        %v533 = vld [vmem:[#allocation5 + $0xd8] sm:$0xff]
        %v534 = vld [vmem:[#allocation5 + $0xe0] sm:$0xff]
        %v535 = vld [vmem:[#allocation5 + $0xe8] sm:$0xff]
        %v536 = vld [vmem:[#allocation5 + $0xf0] sm:$0xff]
        %v537 = vld [vmem:[#allocation5 + $0xf8] sm:$0xff]
        %v538 = vld [vmem:[%s261] sm:$0xff]
        %v539 = vld [vmem:[%s261 + $0x8] sm:$0xff]
        %v540 = vld [vmem:[%s261 + $0x10] sm:$0xff]
        %v541 = vld [vmem:[%s261 + $0x18] sm:$0xff]
        %v542 = vld [vmem:[%s261 + $0x20] sm:$0xff]
        %v543 = vld [vmem:[%s261 + $0x28] sm:$0xff]
        %v544 = vld [vmem:[%s261 + $0x30] sm:$0xff]
        %v545 = vld [vmem:[%s261 + $0x38] sm:$0xff]
        %v546 = vld [vmem:[%s261 + $0x40] sm:$0xff]
        %v547 = vld [vmem:[%s261 + $0x48] sm:$0xff]
        %v548 = vld [vmem:[%s261 + $0x50] sm:$0xff]
        %v549 = vld [vmem:[%s261 + $0x58] sm:$0xff]
        %v550 = vld [vmem:[%s261 + $0x60] sm:$0xff]
        %v551 = vld [vmem:[%s261 + $0x68] sm:$0xff]
        %v552 = vld [vmem:[%s261 + $0x70] sm:$0xff]
        %v553 = vld [vmem:[%s261 + $0x78] sm:$0xff]
        %v554 = vld [vmem:[%s261 + $0x80] sm:$0xff]
        %v555 = vld [vmem:[%s261 + $0x88] sm:$0xff]
        %v556 = vld [vmem:[%s261 + $0x90] sm:$0xff]
        %v557 = vld [vmem:[%s261 + $0x98] sm:$0xff]
        %v558 = vld [vmem:[%s261 + $0xa0] sm:$0xff]
        %v559 = vld [vmem:[%s261 + $0xa8] sm:$0xff]
        %v560 = vld [vmem:[%s261 + $0xb0] sm:$0xff]
        %v561 = vld [vmem:[%s261 + $0xb8] sm:$0xff]
        %v562 = vld [vmem:[%s261 + $0xc0] sm:$0xff]
        %v563 = vld [vmem:[%s261 + $0xc8] sm:$0xff]
        %v564 = vld [vmem:[%s261 + $0xd0] sm:$0xff]
        %v565 = vld [vmem:[%s261 + $0xd8] sm:$0xff]
        %v566 = vld [vmem:[%s261 + $0xe0] sm:$0xff]
        %v567 = vld [vmem:[%s261 + $0xe8] sm:$0xff]
        %v568 = vld [vmem:[%s261 + $0xf0] sm:$0xff]
        %v569 = vld [vmem:[%s261 + $0xf8] sm:$0xff]
        %570 = vmatpush.xpose.msra.mxu0 %v553
        %571 = vmatpush.xpose.msra.mxu0 %v552
        %572 = vmatpush.xpose.msra.mxu0 %v551
        %573 = vmatpush.xpose.msra.mxu0 %v550
        %574 = vmatpush.xpose.msra.mxu0 %v549
        %575 = vmatpush.xpose.msra.mxu0 %v548
        %576 = vmatpush.xpose.msra.mxu0 %v547
        %577 = vmatpush.xpose.msra.mxu0 %v546
        %578 = vmatpush.xpose.msra.mxu0 %v545
        %579 = vmatpush.xpose.msra.mxu0 %v544
        %580 = vmatpush.xpose.msra.mxu0 %v543
        %581 = vmatpush.xpose.msra.mxu0 %v542
        %582 = vmatpush.xpose.msra.mxu0 %v541
        %583 = vmatpush.xpose.msra.mxu0 %v540
        %584 = vmatpush.xpose.msra.mxu0 %v539
        %585 = vmatpush.xpose.msra.mxu0 %v538
        %586 = vmatmul.f32.gmra.mxu0 %v506
        %v587 = vpop.f32.mrf.mxu0
        %v588 = vadd.f32 0.0, %v587
        %589 = vmatmul.f32.gmra.mxu0 %v507
        %v590 = vpop.f32.mrf.mxu0
        %v591 = vadd.f32 0.0, %v590
        %592 = vmatmul.f32.gmra.mxu0 %v508
        %v593 = vpop.f32.mrf.mxu0
        %v594 = vadd.f32 0.0, %v593
        %595 = vmatmul.f32.gmra.mxu0 %v509
        %v596 = vpop.f32.mrf.mxu0
        %v597 = vadd.f32 0.0, %v596
        %598 = vmatmul.f32.gmra.mxu0 %v510
        %v599 = vpop.f32.mrf.mxu0
        %v600 = vadd.f32 0.0, %v599
        %601 = vmatmul.f32.gmra.mxu0 %v511
        %v602 = vpop.f32.mrf.mxu0
        %v603 = vadd.f32 0.0, %v602
        %604 = vmatmul.f32.gmra.mxu0 %v512
        %v605 = vpop.f32.mrf.mxu0
        %v606 = vadd.f32 0.0, %v605
        %607 = vmatmul.f32.gmra.mxu0 %v513
        %v608 = vpop.f32.mrf.mxu0
        %v609 = vadd.f32 0.0, %v608
        %610 = vmatmul.f32.gmra.mxu0 %v514
        %v611 = vpop.f32.mrf.mxu0
        %v612 = vadd.f32 0.0, %v611
        %613 = vmatmul.f32.gmra.mxu0 %v515
        %v614 = vpop.f32.mrf.mxu0
        %v615 = vadd.f32 0.0, %v614
        %616 = vmatmul.f32.gmra.mxu0 %v516
        %v617 = vpop.f32.mrf.mxu0
        %v618 = vadd.f32 0.0, %v617
        %619 = vmatmul.f32.gmra.mxu0 %v517
        %v620 = vpop.f32.mrf.mxu0
        %v621 = vadd.f32 0.0, %v620
        %622 = vmatmul.f32.gmra.mxu0 %v518
        %v623 = vpop.f32.mrf.mxu0
        %v624 = vadd.f32 0.0, %v623
        %625 = vmatmul.f32.gmra.mxu0 %v519
        %v626 = vpop.f32.mrf.mxu0
        %v627 = vadd.f32 0.0, %v626
        %628 = vmatmul.f32.gmra.mxu0 %v520
        %v629 = vpop.f32.mrf.mxu0
        %v630 = vadd.f32 0.0, %v629
        %631 = vmatmul.f32.gmra.mxu0 %v521
        %v632 = vpop.f32.mrf.mxu0
        %v633 = vadd.f32 0.0, %v632
        %634 = vmatmul.f32.gmra.mxu0 %v522
        %v635 = vpop.f32.mrf.mxu0
        %v636 = vadd.f32 0.0, %v635
        %637 = vmatmul.f32.gmra.mxu0 %v523
        %v638 = vpop.f32.mrf.mxu0
        %v639 = vadd.f32 0.0, %v638
        %640 = vmatmul.f32.gmra.mxu0 %v524
        %v641 = vpop.f32.mrf.mxu0
        %v642 = vadd.f32 0.0, %v641
        %643 = vmatmul.f32.gmra.mxu0 %v525
        %v644 = vpop.f32.mrf.mxu0
        %v645 = vadd.f32 0.0, %v644
        %646 = vmatmul.f32.gmra.mxu0 %v526
        %v647 = vpop.f32.mrf.mxu0
        %v648 = vadd.f32 0.0, %v647
        %649 = vmatmul.f32.gmra.mxu0 %v527
        %v650 = vpop.f32.mrf.mxu0
        %v651 = vadd.f32 0.0, %v650
        %652 = vmatmul.f32.gmra.mxu0 %v528
        %v653 = vpop.f32.mrf.mxu0
        %v654 = vadd.f32 0.0, %v653
        %655 = vmatmul.f32.gmra.mxu0 %v529
        %v656 = vpop.f32.mrf.mxu0
        %v657 = vadd.f32 0.0, %v656
        %658 = vmatmul.f32.gmra.mxu0 %v530
        %v659 = vpop.f32.mrf.mxu0
        %v660 = vadd.f32 0.0, %v659
        %661 = vmatmul.f32.gmra.mxu0 %v531
        %v662 = vpop.f32.mrf.mxu0
        %v663 = vadd.f32 0.0, %v662
        %664 = vmatmul.f32.gmra.mxu0 %v532
        %v665 = vpop.f32.mrf.mxu0
        %v666 = vadd.f32 0.0, %v665
        %667 = vmatmul.f32.gmra.mxu0 %v533
        %v668 = vpop.f32.mrf.mxu0
        %v669 = vadd.f32 0.0, %v668
        %670 = vmatmul.f32.gmra.mxu0 %v534
        %v671 = vpop.f32.mrf.mxu0
        %v672 = vadd.f32 0.0, %v671
        %673 = vmatmul.f32.gmra.mxu0 %v535
        %v674 = vpop.f32.mrf.mxu0
        %v675 = vadd.f32 0.0, %v674
        %676 = vmatmul.f32.gmra.mxu0 %v536
        %v677 = vpop.f32.mrf.mxu0
        %v678 = vadd.f32 0.0, %v677
        %679 = vmatmul.f32.gmra.mxu0 %v537
        %v680 = vpop.f32.mrf.mxu0
        %v681 = vadd.f32 0.0, %v680
        %682 = vdwg.mxu0
        %683 = vmatpush.xpose.msra.mxu0 %v569
        %684 = vmatpush.xpose.msra.mxu0 %v568
        %685 = vmatpush.xpose.msra.mxu0 %v567
        %686 = vmatpush.xpose.msra.mxu0 %v566
        %687 = vmatpush.xpose.msra.mxu0 %v565
        %688 = vmatpush.xpose.msra.mxu0 %v564
        %689 = vmatpush.xpose.msra.mxu0 %v563
        %690 = vmatpush.xpose.msra.mxu0 %v562
        %691 = vmatpush.xpose.msra.mxu0 %v561
        %692 = vmatpush.xpose.msra.mxu0 %v560
        %693 = vmatpush.xpose.msra.mxu0 %v559
        %694 = vmatpush.xpose.msra.mxu0 %v558
        %695 = vmatpush.xpose.msra.mxu0 %v557
        %696 = vmatpush.xpose.msra.mxu0 %v556
        %697 = vmatpush.xpose.msra.mxu0 %v555
        %698 = vmatpush.xpose.msra.mxu0 %v554
        %699 = vmatmul.f32.gmra.mxu0 %v506
        %v700 = vpop.f32.mrf.mxu0
        %v701 = vadd.f32 0.0, %v700
        %702 = vmatmul.f32.gmra.mxu0 %v507
        %v703 = vpop.f32.mrf.mxu0
        %v704 = vadd.f32 0.0, %v703
        %705 = vmatmul.f32.gmra.mxu0 %v508
        %v706 = vpop.f32.mrf.mxu0
        %v707 = vadd.f32 0.0, %v706
        %708 = vmatmul.f32.gmra.mxu0 %v509
        %v709 = vpop.f32.mrf.mxu0
        %v710 = vadd.f32 0.0, %v709
        %711 = vmatmul.f32.gmra.mxu0 %v510
        %v712 = vpop.f32.mrf.mxu0
        %v713 = vadd.f32 0.0, %v712
        %714 = vmatmul.f32.gmra.mxu0 %v511
        %v715 = vpop.f32.mrf.mxu0
        %v716 = vadd.f32 0.0, %v715
        %717 = vmatmul.f32.gmra.mxu0 %v512
        %v718 = vpop.f32.mrf.mxu0
        %v719 = vadd.f32 0.0, %v718
        %720 = vmatmul.f32.gmra.mxu0 %v513
        %v721 = vpop.f32.mrf.mxu0
        %v722 = vadd.f32 0.0, %v721
        %723 = vmatmul.f32.gmra.mxu0 %v514
        %v724 = vpop.f32.mrf.mxu0
        %v725 = vadd.f32 0.0, %v724
        %726 = vmatmul.f32.gmra.mxu0 %v515
        %v727 = vpop.f32.mrf.mxu0
        %v728 = vadd.f32 0.0, %v727
        %729 = vmatmul.f32.gmra.mxu0 %v516
        %v730 = vpop.f32.mrf.mxu0
        %v731 = vadd.f32 0.0, %v730
        %732 = vmatmul.f32.gmra.mxu0 %v517
        %v733 = vpop.f32.mrf.mxu0
        %v734 = vadd.f32 0.0, %v733
        %735 = vmatmul.f32.gmra.mxu0 %v518
        %v736 = vpop.f32.mrf.mxu0
        %v737 = vadd.f32 0.0, %v736
        %738 = vmatmul.f32.gmra.mxu0 %v519
        %v739 = vpop.f32.mrf.mxu0
        %v740 = vadd.f32 0.0, %v739
        %741 = vmatmul.f32.gmra.mxu0 %v520
        %v742 = vpop.f32.mrf.mxu0
        %v743 = vadd.f32 0.0, %v742
        %744 = vmatmul.f32.gmra.mxu0 %v521
        %v745 = vpop.f32.mrf.mxu0
        %v746 = vadd.f32 0.0, %v745
        %747 = vmatmul.f32.gmra.mxu0 %v522
        %v748 = vpop.f32.mrf.mxu0
        %v749 = vadd.f32 0.0, %v748
        %750 = vmatmul.f32.gmra.mxu0 %v523
        %v751 = vpop.f32.mrf.mxu0
        %v752 = vadd.f32 0.0, %v751
        %753 = vmatmul.f32.gmra.mxu0 %v524
        %v754 = vpop.f32.mrf.mxu0
        %v755 = vadd.f32 0.0, %v754
        %756 = vmatmul.f32.gmra.mxu0 %v525
        %v757 = vpop.f32.mrf.mxu0
        %v758 = vadd.f32 0.0, %v757
        %759 = vmatmul.f32.gmra.mxu0 %v526
        %v760 = vpop.f32.mrf.mxu0
        %v761 = vadd.f32 0.0, %v760
        %762 = vmatmul.f32.gmra.mxu0 %v527
        %v763 = vpop.f32.mrf.mxu0
        %v764 = vadd.f32 0.0, %v763
        %765 = vmatmul.f32.gmra.mxu0 %v528
        %v766 = vpop.f32.mrf.mxu0
        %v767 = vadd.f32 0.0, %v766
        %768 = vmatmul.f32.gmra.mxu0 %v529
        %v769 = vpop.f32.mrf.mxu0
        %v770 = vadd.f32 0.0, %v769
        %771 = vmatmul.f32.gmra.mxu0 %v530
        %v772 = vpop.f32.mrf.mxu0
        %v773 = vadd.f32 0.0, %v772
        %774 = vmatmul.f32.gmra.mxu0 %v531
        %v775 = vpop.f32.mrf.mxu0
        %v776 = vadd.f32 0.0, %v775
        %777 = vmatmul.f32.gmra.mxu0 %v532
        %v778 = vpop.f32.mrf.mxu0
        %v779 = vadd.f32 0.0, %v778
        %780 = vmatmul.f32.gmra.mxu0 %v533
        %v781 = vpop.f32.mrf.mxu0
        %v782 = vadd.f32 0.0, %v781
        %783 = vmatmul.f32.gmra.mxu0 %v534
        %v784 = vpop.f32.mrf.mxu0
        %v785 = vadd.f32 0.0, %v784
        %786 = vmatmul.f32.gmra.mxu0 %v535
        %v787 = vpop.f32.mrf.mxu0
        %v788 = vadd.f32 0.0, %v787
        %789 = vmatmul.f32.gmra.mxu0 %v536
        %v790 = vpop.f32.mrf.mxu0
        %v791 = vadd.f32 0.0, %v790
        %792 = vmatmul.f32.gmra.mxu0 %v537
        %v793 = vpop.f32.mrf.mxu0
        %v794 = vadd.f32 0.0, %v793
        %795 = vdwg.mxu0
        %v796 = vld [vmem:[#allocation2] sm:$0xff]
        %v797 = vld [vmem:[#allocation2 + $0x8] sm:$0xff]
        %v798 = vld [vmem:[#allocation2 + $0x10] sm:$0xff]
        %v799 = vld [vmem:[#allocation2 + $0x18] sm:$0xff]
        %v800 = vld [vmem:[#allocation2 + $0x20] sm:$0xff]
        %v801 = vld [vmem:[#allocation2 + $0x28] sm:$0xff]
        %v802 = vld [vmem:[#allocation2 + $0x30] sm:$0xff]
        %v803 = vld [vmem:[#allocation2 + $0x38] sm:$0xff]
        %v804 = vld [vmem:[#allocation2 + $0x40] sm:$0xff]
        %v805 = vld [vmem:[#allocation2 + $0x48] sm:$0xff]
        %v806 = vld [vmem:[#allocation2 + $0x50] sm:$0xff]
        %v807 = vld [vmem:[#allocation2 + $0x58] sm:$0xff]
        %v808 = vld [vmem:[#allocation2 + $0x60] sm:$0xff]
        %v809 = vld [vmem:[#allocation2 + $0x68] sm:$0xff]
        %v810 = vld [vmem:[#allocation2 + $0x70] sm:$0xff]
        %v811 = vld [vmem:[#allocation2 + $0x78] sm:$0xff]
        %v812 = vld [vmem:[#allocation2 + $0x80] sm:$0xff]
        %v813 = vld [vmem:[#allocation2 + $0x88] sm:$0xff]
        %v814 = vld [vmem:[#allocation2 + $0x90] sm:$0xff]
        %v815 = vld [vmem:[#allocation2 + $0x98] sm:$0xff]
        %v816 = vld [vmem:[#allocation2 + $0xa0] sm:$0xff]
        %v817 = vld [vmem:[#allocation2 + $0xa8] sm:$0xff]
        %v818 = vld [vmem:[#allocation2 + $0xb0] sm:$0xff]
        %v819 = vld [vmem:[#allocation2 + $0xb8] sm:$0xff]
        %v820 = vld [vmem:[#allocation2 + $0xc0] sm:$0xff]
        %v821 = vld [vmem:[#allocation2 + $0xc8] sm:$0xff]
        %v822 = vld [vmem:[#allocation2 + $0xd0] sm:$0xff]
        %v823 = vld [vmem:[#allocation2 + $0xd8] sm:$0xff]
        %v824 = vld [vmem:[#allocation2 + $0xe0] sm:$0xff]
        %v825 = vld [vmem:[#allocation2 + $0xe8] sm:$0xff]
        %v826 = vld [vmem:[#allocation2 + $0xf0] sm:$0xff]
        %v827 = vld [vmem:[#allocation2 + $0xf8] sm:$0xff]
        %v828 = vmax.f32 %v588, %v701
        %829 = vmax.xlane.f32.xlu0 %v828
        %v830 = vpop.xlane.xlu0 %829
        %v831 = vmax.f32 %v591, %v704
        %832 = vmax.xlane.f32.xlu0 %v831
        %v833 = vpop.xlane.xlu0 %832
        %v834 = vmax.f32 %v594, %v707
        %835 = vmax.xlane.f32.xlu0 %v834
        %v836 = vpop.xlane.xlu0 %835
        %v837 = vmax.f32 %v597, %v710
        %838 = vmax.xlane.f32.xlu0 %v837
        %v839 = vpop.xlane.xlu0 %838
        %v840 = vmax.f32 %v600, %v713
        %841 = vmax.xlane.f32.xlu0 %v840
        %v842 = vpop.xlane.xlu0 %841
        %v843 = vmax.f32 %v603, %v716
        %844 = vmax.xlane.f32.xlu0 %v843
        %v845 = vpop.xlane.xlu0 %844
        %v846 = vmax.f32 %v606, %v719
        %847 = vmax.xlane.f32.xlu0 %v846
        %v848 = vpop.xlane.xlu0 %847
        %v849 = vmax.f32 %v609, %v722
        %850 = vmax.xlane.f32.xlu0 %v849
        %v851 = vpop.xlane.xlu0 %850
        %v852 = vmax.f32 %v612, %v725
        %853 = vmax.xlane.f32.xlu0 %v852
        %v854 = vpop.xlane.xlu0 %853
        %v855 = vmax.f32 %v615, %v728
        %856 = vmax.xlane.f32.xlu0 %v855
        %v857 = vpop.xlane.xlu0 %856
        %v858 = vmax.f32 %v618, %v731
        %859 = vmax.xlane.f32.xlu0 %v858
        %v860 = vpop.xlane.xlu0 %859
        %v861 = vmax.f32 %v621, %v734
        %862 = vmax.xlane.f32.xlu0 %v861
        %v863 = vpop.xlane.xlu0 %862
        %v864 = vmax.f32 %v624, %v737
        %865 = vmax.xlane.f32.xlu0 %v864
        %v866 = vpop.xlane.xlu0 %865
        %v867 = vmax.f32 %v627, %v740
        %868 = vmax.xlane.f32.xlu0 %v867
        %v869 = vpop.xlane.xlu0 %868
        %v870 = vmax.f32 %v630, %v743
        %871 = vmax.xlane.f32.xlu0 %v870
        %v872 = vpop.xlane.xlu0 %871
        %v873 = vmax.f32 %v633, %v746
        %874 = vmax.xlane.f32.xlu0 %v873
        %v875 = vpop.xlane.xlu0 %874
        %v876 = vmax.f32 %v636, %v749
        %877 = vmax.xlane.f32.xlu0 %v876
        %v878 = vpop.xlane.xlu0 %877
        %v879 = vmax.f32 %v639, %v752
        %880 = vmax.xlane.f32.xlu0 %v879
        %v881 = vpop.xlane.xlu0 %880
        %v882 = vmax.f32 %v642, %v755
        %883 = vmax.xlane.f32.xlu0 %v882
        %v884 = vpop.xlane.xlu0 %883
        %v885 = vmax.f32 %v645, %v758
        %886 = vmax.xlane.f32.xlu0 %v885
        %v887 = vpop.xlane.xlu0 %886
        %v888 = vmax.f32 %v648, %v761
        %889 = vmax.xlane.f32.xlu0 %v888
        %v890 = vpop.xlane.xlu0 %889
        %v891 = vmax.f32 %v651, %v764
        %892 = vmax.xlane.f32.xlu0 %v891
        %v893 = vpop.xlane.xlu0 %892
        %v894 = vmax.f32 %v654, %v767
        %895 = vmax.xlane.f32.xlu0 %v894
        %v896 = vpop.xlane.xlu0 %895
        %v897 = vmax.f32 %v657, %v770
        %898 = vmax.xlane.f32.xlu0 %v897
        %v899 = vpop.xlane.xlu0 %898
        %v900 = vmax.f32 %v660, %v773
        %901 = vmax.xlane.f32.xlu0 %v900
        %v902 = vpop.xlane.xlu0 %901
        %v903 = vmax.f32 %v663, %v776
        %904 = vmax.xlane.f32.xlu0 %v903
        %v905 = vpop.xlane.xlu0 %904
        %v906 = vmax.f32 %v666, %v779
        %907 = vmax.xlane.f32.xlu0 %v906
        %v908 = vpop.xlane.xlu0 %907
        %v909 = vmax.f32 %v669, %v782
        %910 = vmax.xlane.f32.xlu0 %v909
        %v911 = vpop.xlane.xlu0 %910
        %v912 = vmax.f32 %v672, %v785
        %913 = vmax.xlane.f32.xlu0 %v912
        %v914 = vpop.xlane.xlu0 %913
        %v915 = vmax.f32 %v675, %v788
        %916 = vmax.xlane.f32.xlu0 %v915
        %v917 = vpop.xlane.xlu0 %916
        %v918 = vmax.f32 %v678, %v791
        %919 = vmax.xlane.f32.xlu0 %v918
        %v920 = vpop.xlane.xlu0 %919
        %v921 = vmax.f32 %v681, %v794
        %922 = vmax.xlane.f32.xlu0 %v921
        %v923 = vpop.xlane.xlu0 %922
        %v924 = vmax.f32 %v796, %v830
        %v925 = vmax.f32 %v797, %v833
        %v926 = vmax.f32 %v798, %v836
        %v927 = vmax.f32 %v799, %v839
        %v928 = vmax.f32 %v800, %v842
        %v929 = vmax.f32 %v801, %v845
        %v930 = vmax.f32 %v802, %v848
        %v931 = vmax.f32 %v803, %v851
        %v932 = vmax.f32 %v804, %v854
        %v933 = vmax.f32 %v805, %v857
        %v934 = vmax.f32 %v806, %v860
        %v935 = vmax.f32 %v807, %v863
        %v936 = vmax.f32 %v808, %v866
        %v937 = vmax.f32 %v809, %v869
        %v938 = vmax.f32 %v810, %v872
        %v939 = vmax.f32 %v811, %v875
        %v940 = vmax.f32 %v812, %v878
        %v941 = vmax.f32 %v813, %v881
        %v942 = vmax.f32 %v814, %v884
        %v943 = vmax.f32 %v815, %v887
        %v944 = vmax.f32 %v816, %v890
        %v945 = vmax.f32 %v817, %v893
        %v946 = vmax.f32 %v818, %v896
        %v947 = vmax.f32 %v819, %v899
        %v948 = vmax.f32 %v820, %v902
        %v949 = vmax.f32 %v821, %v905
        %v950 = vmax.f32 %v822, %v908
        %v951 = vmax.f32 %v823, %v911
        %v952 = vmax.f32 %v824, %v914
        %v953 = vmax.f32 %v825, %v917
        %v954 = vmax.f32 %v826, %v920
        %v955 = vmax.f32 %v827, %v923
        %v956 = vsub.f32 %v796, %v924
        %v957 = vsub.f32 %v797, %v925
        %v958 = vsub.f32 %v798, %v926
        %v959 = vsub.f32 %v799, %v927
        %v960 = vsub.f32 %v800, %v928
        %v961 = vsub.f32 %v801, %v929
        %v962 = vsub.f32 %v802, %v930
        %v963 = vsub.f32 %v803, %v931
        %v964 = vsub.f32 %v804, %v932
        %v965 = vsub.f32 %v805, %v933
        %v966 = vsub.f32 %v806, %v934
        %v967 = vsub.f32 %v807, %v935
        %v968 = vsub.f32 %v808, %v936
        %v969 = vsub.f32 %v809, %v937
        %v970 = vsub.f32 %v810, %v938
        %v971 = vsub.f32 %v811, %v939
        %v972 = vsub.f32 %v812, %v940
        %v973 = vsub.f32 %v813, %v941
        %v974 = vsub.f32 %v814, %v942
        %v975 = vsub.f32 %v815, %v943
        %v976 = vsub.f32 %v816, %v944
        %v977 = vsub.f32 %v817, %v945
        %v978 = vsub.f32 %v818, %v946
        %v979 = vsub.f32 %v819, %v947
        %v980 = vsub.f32 %v820, %v948
        %v981 = vsub.f32 %v821, %v949
        %v982 = vsub.f32 %v822, %v950
        %v983 = vsub.f32 %v823, %v951
        %v984 = vsub.f32 %v824, %v952
        %v985 = vsub.f32 %v825, %v953
        %v986 = vsub.f32 %v826, %v954
        %v987 = vsub.f32 %v827, %v955
        %v988 = vmul.f32 %v956, 1.442695
        %v989 = vpow.pop %v988
        %v990 = vmul.f32 %v957, 1.442695
        %v991 = vpow.pop %v990
        %v992 = vmul.f32 %v958, 1.442695
        %v993 = vpow.pop %v992
        %v994 = vmul.f32 %v959, 1.442695
        %v995 = vpow.pop %v994
        %v996 = vmul.f32 %v960, 1.442695
        %v997 = vpow.pop %v996
        %v998 = vmul.f32 %v961, 1.442695
        %v999 = vpow.pop %v998
        %v1000 = vmul.f32 %v962, 1.442695
        %v1001 = vpow.pop %v1000
        %v1002 = vmul.f32 %v963, 1.442695
        %v1003 = vpow.pop %v1002
        %v1004 = vmul.f32 %v964, 1.442695
        %v1005 = vpow.pop %v1004
        %v1006 = vmul.f32 %v965, 1.442695
        %v1007 = vpow.pop %v1006
        %v1008 = vmul.f32 %v966, 1.442695
        %v1009 = vpow.pop %v1008
        %v1010 = vmul.f32 %v967, 1.442695
        %v1011 = vpow.pop %v1010
        %v1012 = vmul.f32 %v968, 1.442695
        %v1013 = vpow.pop %v1012
        %v1014 = vmul.f32 %v969, 1.442695
        %v1015 = vpow.pop %v1014
        %v1016 = vmul.f32 %v970, 1.442695
        %v1017 = vpow.pop %v1016
        %v1018 = vmul.f32 %v971, 1.442695
        %v1019 = vpow.pop %v1018
        %v1020 = vmul.f32 %v972, 1.442695
        %v1021 = vpow.pop %v1020
        %v1022 = vmul.f32 %v973, 1.442695
        %v1023 = vpow.pop %v1022
        %v1024 = vmul.f32 %v974, 1.442695
        %v1025 = vpow.pop %v1024
        %v1026 = vmul.f32 %v975, 1.442695
        %v1027 = vpow.pop %v1026
        %v1028 = vmul.f32 %v976, 1.442695
        %v1029 = vpow.pop %v1028
        %v1030 = vmul.f32 %v977, 1.442695
        %v1031 = vpow.pop %v1030
        %v1032 = vmul.f32 %v978, 1.442695
        %v1033 = vpow.pop %v1032
        %v1034 = vmul.f32 %v979, 1.442695
        %v1035 = vpow.pop %v1034
        %v1036 = vmul.f32 %v980, 1.442695
        %v1037 = vpow.pop %v1036
        %v1038 = vmul.f32 %v981, 1.442695
        %v1039 = vpow.pop %v1038
        %v1040 = vmul.f32 %v982, 1.442695
        %v1041 = vpow.pop %v1040
        %v1042 = vmul.f32 %v983, 1.442695
        %v1043 = vpow.pop %v1042
        %v1044 = vmul.f32 %v984, 1.442695
        %v1045 = vpow.pop %v1044
        %v1046 = vmul.f32 %v985, 1.442695
        %v1047 = vpow.pop %v1046
        %v1048 = vmul.f32 %v986, 1.442695
        %v1049 = vpow.pop %v1048
        %v1050 = vmul.f32 %v987, 1.442695
        %v1051 = vpow.pop %v1050
        %1053 = vset.pattern.permute.xlu0 0
        %1054 = vperm.xlu0 %1053, %v924
        %v1055 = vpop.permute.xlu0 %1054
        %1058 = vset.pattern.permute.xlu0 0
        %1059 = vperm.xlu0 %1058, %v925
        %v1060 = vpop.permute.xlu0 %1059
        %1063 = vset.pattern.permute.xlu0 0
        %1064 = vperm.xlu0 %1063, %v926
        %v1065 = vpop.permute.xlu0 %1064
        %1068 = vset.pattern.permute.xlu0 0
        %1069 = vperm.xlu0 %1068, %v927
        %v1070 = vpop.permute.xlu0 %1069
        %1073 = vset.pattern.permute.xlu0 0
        %1074 = vperm.xlu0 %1073, %v928
        %v1075 = vpop.permute.xlu0 %1074
        %1078 = vset.pattern.permute.xlu0 0
        %1079 = vperm.xlu0 %1078, %v929
        %v1080 = vpop.permute.xlu0 %1079
        %1083 = vset.pattern.permute.xlu0 0
        %1084 = vperm.xlu0 %1083, %v930
        %v1085 = vpop.permute.xlu0 %1084
        %1088 = vset.pattern.permute.xlu0 0
        %1089 = vperm.xlu0 %1088, %v931
        %v1090 = vpop.permute.xlu0 %1089
        %1093 = vset.pattern.permute.xlu0 0
        %1094 = vperm.xlu0 %1093, %v932
        %v1095 = vpop.permute.xlu0 %1094
        %1098 = vset.pattern.permute.xlu0 0
        %1099 = vperm.xlu0 %1098, %v933
        %v1100 = vpop.permute.xlu0 %1099
        %1103 = vset.pattern.permute.xlu0 0
        %1104 = vperm.xlu0 %1103, %v934
        %v1105 = vpop.permute.xlu0 %1104
        %1108 = vset.pattern.permute.xlu0 0
        %1109 = vperm.xlu0 %1108, %v935
        %v1110 = vpop.permute.xlu0 %1109
        %1113 = vset.pattern.permute.xlu0 0
        %1114 = vperm.xlu0 %1113, %v936
        %v1115 = vpop.permute.xlu0 %1114
        %1118 = vset.pattern.permute.xlu0 0
        %1119 = vperm.xlu0 %1118, %v937
        %v1120 = vpop.permute.xlu0 %1119
        %1123 = vset.pattern.permute.xlu0 0
        %1124 = vperm.xlu0 %1123, %v938
        %v1125 = vpop.permute.xlu0 %1124
        %1128 = vset.pattern.permute.xlu0 0
        %1129 = vperm.xlu0 %1128, %v939
        %v1130 = vpop.permute.xlu0 %1129
        %1133 = vset.pattern.permute.xlu0 0
        %1134 = vperm.xlu0 %1133, %v940
        %v1135 = vpop.permute.xlu0 %1134
        %1138 = vset.pattern.permute.xlu0 0
        %1139 = vperm.xlu0 %1138, %v941
        %v1140 = vpop.permute.xlu0 %1139
        %1143 = vset.pattern.permute.xlu0 0
        %1144 = vperm.xlu0 %1143, %v942
        %v1145 = vpop.permute.xlu0 %1144
        %1148 = vset.pattern.permute.xlu0 0
        %1149 = vperm.xlu0 %1148, %v943
        %v1150 = vpop.permute.xlu0 %1149
        %1153 = vset.pattern.permute.xlu0 0
        %1154 = vperm.xlu0 %1153, %v944
        %v1155 = vpop.permute.xlu0 %1154
        %1158 = vset.pattern.permute.xlu0 0
        %1159 = vperm.xlu0 %1158, %v945
        %v1160 = vpop.permute.xlu0 %1159
        %1163 = vset.pattern.permute.xlu0 0
        %1164 = vperm.xlu0 %1163, %v946
        %v1165 = vpop.permute.xlu0 %1164
        %1168 = vset.pattern.permute.xlu0 0
        %1169 = vperm.xlu0 %1168, %v947
        %v1170 = vpop.permute.xlu0 %1169
        %1173 = vset.pattern.permute.xlu0 0
        %1174 = vperm.xlu0 %1173, %v948
        %v1175 = vpop.permute.xlu0 %1174
        %1178 = vset.pattern.permute.xlu0 0
        %1179 = vperm.xlu0 %1178, %v949
        %v1180 = vpop.permute.xlu0 %1179
        %1183 = vset.pattern.permute.xlu0 0
        %1184 = vperm.xlu0 %1183, %v950
        %v1185 = vpop.permute.xlu0 %1184
        %1188 = vset.pattern.permute.xlu0 0
        %1189 = vperm.xlu0 %1188, %v951
        %v1190 = vpop.permute.xlu0 %1189
        %1193 = vset.pattern.permute.xlu0 0
        %1194 = vperm.xlu0 %1193, %v952
        %v1195 = vpop.permute.xlu0 %1194
        %1198 = vset.pattern.permute.xlu0 0
        %1199 = vperm.xlu0 %1198, %v953
        %v1200 = vpop.permute.xlu0 %1199
        %1203 = vset.pattern.permute.xlu0 0
        %1204 = vperm.xlu0 %1203, %v954
        %v1205 = vpop.permute.xlu0 %1204
        %1208 = vset.pattern.permute.xlu0 0
        %1209 = vperm.xlu0 %1208, %v955
        %v1210 = vpop.permute.xlu0 %1209
        %v1212 = vsub.f32 %v588, %v1055
        %v1213 = vsub.f32 %v701, %v1055
        %v1214 = vsub.f32 %v591, %v1060
        %v1215 = vsub.f32 %v704, %v1060
        %v1216 = vsub.f32 %v594, %v1065
        %v1217 = vsub.f32 %v707, %v1065
        %v1218 = vsub.f32 %v597, %v1070
        %v1219 = vsub.f32 %v710, %v1070
        %v1220 = vsub.f32 %v600, %v1075
        %v1221 = vsub.f32 %v713, %v1075
        %v1222 = vsub.f32 %v603, %v1080
        %v1223 = vsub.f32 %v716, %v1080
        %v1224 = vsub.f32 %v606, %v1085
        %v1225 = vsub.f32 %v719, %v1085
        %v1226 = vsub.f32 %v609, %v1090
        %v1227 = vsub.f32 %v722, %v1090
        %v1228 = vsub.f32 %v612, %v1095
        %v1229 = vsub.f32 %v725, %v1095
        %v1230 = vsub.f32 %v615, %v1100
        %v1231 = vsub.f32 %v728, %v1100
        %v1232 = vsub.f32 %v618, %v1105
        %v1233 = vsub.f32 %v731, %v1105
        %v1234 = vsub.f32 %v621, %v1110
        %v1235 = vsub.f32 %v734, %v1110
        %v1236 = vsub.f32 %v624, %v1115
        %v1237 = vsub.f32 %v737, %v1115
        %v1238 = vsub.f32 %v627, %v1120
        %v1239 = vsub.f32 %v740, %v1120
        %v1240 = vsub.f32 %v630, %v1125
        %v1241 = vsub.f32 %v743, %v1125
        %v1242 = vsub.f32 %v633, %v1130
        %v1243 = vsub.f32 %v746, %v1130
        %v1244 = vsub.f32 %v636, %v1135
        %v1245 = vsub.f32 %v749, %v1135
        %v1246 = vsub.f32 %v639, %v1140
        %v1247 = vsub.f32 %v752, %v1140
        %v1248 = vsub.f32 %v642, %v1145
        %v1249 = vsub.f32 %v755, %v1145
        %v1250 = vsub.f32 %v645, %v1150
        %v1251 = vsub.f32 %v758, %v1150
        %v1252 = vsub.f32 %v648, %v1155
        %v1253 = vsub.f32 %v761, %v1155
        %v1254 = vsub.f32 %v651, %v1160
        %v1255 = vsub.f32 %v764, %v1160
        %v1256 = vsub.f32 %v654, %v1165
        %v1257 = vsub.f32 %v767, %v1165
        %v1258 = vsub.f32 %v657, %v1170
        %v1259 = vsub.f32 %v770, %v1170
        %v1260 = vsub.f32 %v660, %v1175
        %v1261 = vsub.f32 %v773, %v1175
        %v1262 = vsub.f32 %v663, %v1180
        %v1263 = vsub.f32 %v776, %v1180
        %v1264 = vsub.f32 %v666, %v1185
        %v1265 = vsub.f32 %v779, %v1185
        %v1266 = vsub.f32 %v669, %v1190
        %v1267 = vsub.f32 %v782, %v1190
        %v1268 = vsub.f32 %v672, %v1195
        %v1269 = vsub.f32 %v785, %v1195
        %v1270 = vsub.f32 %v675, %v1200
        %v1271 = vsub.f32 %v788, %v1200
        %v1272 = vsub.f32 %v678, %v1205
        %v1273 = vsub.f32 %v791, %v1205
        %v1274 = vsub.f32 %v681, %v1210
        %v1275 = vsub.f32 %v794, %v1210
        %v1276 = vmul.f32 %v1212, 1.442695
        %v1277 = vpow.pop %v1276
        %v1278 = vmul.f32 %v1213, 1.442695
        %v1279 = vpow.pop %v1278
        %v1280 = vmul.f32 %v1214, 1.442695
        %v1281 = vpow.pop %v1280
        %v1282 = vmul.f32 %v1215, 1.442695
        %v1283 = vpow.pop %v1282
        %v1284 = vmul.f32 %v1216, 1.442695
        %v1285 = vpow.pop %v1284
        %v1286 = vmul.f32 %v1217, 1.442695
        %v1287 = vpow.pop %v1286
        %v1288 = vmul.f32 %v1218, 1.442695
        %v1289 = vpow.pop %v1288
        %v1290 = vmul.f32 %v1219, 1.442695
        %v1291 = vpow.pop %v1290
        %v1292 = vmul.f32 %v1220, 1.442695
        %v1293 = vpow.pop %v1292
        %v1294 = vmul.f32 %v1221, 1.442695
        %v1295 = vpow.pop %v1294
        %v1296 = vmul.f32 %v1222, 1.442695
        %v1297 = vpow.pop %v1296
        %v1298 = vmul.f32 %v1223, 1.442695
        %v1299 = vpow.pop %v1298
        %v1300 = vmul.f32 %v1224, 1.442695
        %v1301 = vpow.pop %v1300
        %v1302 = vmul.f32 %v1225, 1.442695
        %v1303 = vpow.pop %v1302
        %v1304 = vmul.f32 %v1226, 1.442695
        %v1305 = vpow.pop %v1304
        %v1306 = vmul.f32 %v1227, 1.442695
        %v1307 = vpow.pop %v1306
        %v1308 = vmul.f32 %v1228, 1.442695
        %v1309 = vpow.pop %v1308
        %v1310 = vmul.f32 %v1229, 1.442695
        %v1311 = vpow.pop %v1310
        %v1312 = vmul.f32 %v1230, 1.442695
        %v1313 = vpow.pop %v1312
        %v1314 = vmul.f32 %v1231, 1.442695
        %v1315 = vpow.pop %v1314
        %v1316 = vmul.f32 %v1232, 1.442695
        %v1317 = vpow.pop %v1316
        %v1318 = vmul.f32 %v1233, 1.442695
        %v1319 = vpow.pop %v1318
        %v1320 = vmul.f32 %v1234, 1.442695
        %v1321 = vpow.pop %v1320
        %v1322 = vmul.f32 %v1235, 1.442695
        %v1323 = vpow.pop %v1322
        %v1324 = vmul.f32 %v1236, 1.442695
        %v1325 = vpow.pop %v1324
        %v1326 = vmul.f32 %v1237, 1.442695
        %v1327 = vpow.pop %v1326
        %v1328 = vmul.f32 %v1238, 1.442695
        %v1329 = vpow.pop %v1328
        %v1330 = vmul.f32 %v1239, 1.442695
        %v1331 = vpow.pop %v1330
        %v1332 = vmul.f32 %v1240, 1.442695
        %v1333 = vpow.pop %v1332
        %v1334 = vmul.f32 %v1241, 1.442695
        %v1335 = vpow.pop %v1334
        %v1336 = vmul.f32 %v1242, 1.442695
        %v1337 = vpow.pop %v1336
        %v1338 = vmul.f32 %v1243, 1.442695
        %v1339 = vpow.pop %v1338
        %v1340 = vmul.f32 %v1244, 1.442695
        %v1341 = vpow.pop %v1340
        %v1342 = vmul.f32 %v1245, 1.442695
        %v1343 = vpow.pop %v1342
        %v1344 = vmul.f32 %v1246, 1.442695
        %v1345 = vpow.pop %v1344
        %v1346 = vmul.f32 %v1247, 1.442695
        %v1347 = vpow.pop %v1346
        %v1348 = vmul.f32 %v1248, 1.442695
        %v1349 = vpow.pop %v1348
        %v1350 = vmul.f32 %v1249, 1.442695
        %v1351 = vpow.pop %v1350
        %v1352 = vmul.f32 %v1250, 1.442695
        %v1353 = vpow.pop %v1352
        %v1354 = vmul.f32 %v1251, 1.442695
        %v1355 = vpow.pop %v1354
        %v1356 = vmul.f32 %v1252, 1.442695
        %v1357 = vpow.pop %v1356
        %v1358 = vmul.f32 %v1253, 1.442695
        %v1359 = vpow.pop %v1358
        %v1360 = vmul.f32 %v1254, 1.442695
        %v1361 = vpow.pop %v1360
        %v1362 = vmul.f32 %v1255, 1.442695
        %v1363 = vpow.pop %v1362
        %v1364 = vmul.f32 %v1256, 1.442695
        %v1365 = vpow.pop %v1364
        %v1366 = vmul.f32 %v1257, 1.442695
        %v1367 = vpow.pop %v1366
        %v1368 = vmul.f32 %v1258, 1.442695
        %v1369 = vpow.pop %v1368
        %v1370 = vmul.f32 %v1259, 1.442695
        %v1371 = vpow.pop %v1370
        %v1372 = vmul.f32 %v1260, 1.442695
        %v1373 = vpow.pop %v1372
        %v1374 = vmul.f32 %v1261, 1.442695
        %v1375 = vpow.pop %v1374
        %v1376 = vmul.f32 %v1262, 1.442695
        %v1377 = vpow.pop %v1376
        %v1378 = vmul.f32 %v1263, 1.442695
        %v1379 = vpow.pop %v1378
        %v1380 = vmul.f32 %v1264, 1.442695
        %v1381 = vpow.pop %v1380
        %v1382 = vmul.f32 %v1265, 1.442695
        %v1383 = vpow.pop %v1382
        %v1384 = vmul.f32 %v1266, 1.442695
        %v1385 = vpow.pop %v1384
        %v1386 = vmul.f32 %v1267, 1.442695
        %v1387 = vpow.pop %v1386
        %v1388 = vmul.f32 %v1268, 1.442695
        %v1389 = vpow.pop %v1388
        %v1390 = vmul.f32 %v1269, 1.442695
        %v1391 = vpow.pop %v1390
        %v1392 = vmul.f32 %v1270, 1.442695
        %v1393 = vpow.pop %v1392
        %v1394 = vmul.f32 %v1271, 1.442695
        %v1395 = vpow.pop %v1394
        %v1396 = vmul.f32 %v1272, 1.442695
        %v1397 = vpow.pop %v1396
        %v1398 = vmul.f32 %v1273, 1.442695
        %v1399 = vpow.pop %v1398
        %v1400 = vmul.f32 %v1274, 1.442695
        %v1401 = vpow.pop %v1400
        %v1402 = vmul.f32 %v1275, 1.442695
        %v1403 = vpow.pop %v1402
        %v1404 = vld [vmem:[#allocation3] sm:$0xff]
        %v1405 = vld [vmem:[#allocation3 + $0x8] sm:$0xff]
        %v1406 = vld [vmem:[#allocation3 + $0x10] sm:$0xff]
        %v1407 = vld [vmem:[#allocation3 + $0x18] sm:$0xff]
        %v1408 = vld [vmem:[#allocation3 + $0x20] sm:$0xff]
        %v1409 = vld [vmem:[#allocation3 + $0x28] sm:$0xff]
        %v1410 = vld [vmem:[#allocation3 + $0x30] sm:$0xff]
        %v1411 = vld [vmem:[#allocation3 + $0x38] sm:$0xff]
        %v1412 = vld [vmem:[#allocation3 + $0x40] sm:$0xff]
        %v1413 = vld [vmem:[#allocation3 + $0x48] sm:$0xff]
        %v1414 = vld [vmem:[#allocation3 + $0x50] sm:$0xff]
        %v1415 = vld [vmem:[#allocation3 + $0x58] sm:$0xff]
        %v1416 = vld [vmem:[#allocation3 + $0x60] sm:$0xff]
        %v1417 = vld [vmem:[#allocation3 + $0x68] sm:$0xff]
        %v1418 = vld [vmem:[#allocation3 + $0x70] sm:$0xff]
        %v1419 = vld [vmem:[#allocation3 + $0x78] sm:$0xff]
        %v1420 = vld [vmem:[#allocation3 + $0x80] sm:$0xff]
        %v1421 = vld [vmem:[#allocation3 + $0x88] sm:$0xff]
        %v1422 = vld [vmem:[#allocation3 + $0x90] sm:$0xff]
        %v1423 = vld [vmem:[#allocation3 + $0x98] sm:$0xff]
        %v1424 = vld [vmem:[#allocation3 + $0xa0] sm:$0xff]
        %v1425 = vld [vmem:[#allocation3 + $0xa8] sm:$0xff]
        %v1426 = vld [vmem:[#allocation3 + $0xb0] sm:$0xff]
        %v1427 = vld [vmem:[#allocation3 + $0xb8] sm:$0xff]
        %v1428 = vld [vmem:[#allocation3 + $0xc0] sm:$0xff]
        %v1429 = vld [vmem:[#allocation3 + $0xc8] sm:$0xff]
        %v1430 = vld [vmem:[#allocation3 + $0xd0] sm:$0xff]
        %v1431 = vld [vmem:[#allocation3 + $0xd8] sm:$0xff]
        %v1432 = vld [vmem:[#allocation3 + $0xe0] sm:$0xff]
        %v1433 = vld [vmem:[#allocation3 + $0xe8] sm:$0xff]
        %v1434 = vld [vmem:[#allocation3 + $0xf0] sm:$0xff]
        %v1435 = vld [vmem:[#allocation3 + $0xf8] sm:$0xff]
        %v1436 = vmul.f32 %v989, %v1404
        %v1437 = vmul.f32 %v991, %v1405
        %v1438 = vmul.f32 %v993, %v1406
        %v1439 = vmul.f32 %v995, %v1407
        %v1440 = vmul.f32 %v997, %v1408
        %v1441 = vmul.f32 %v999, %v1409
        %v1442 = vmul.f32 %v1001, %v1410
        %v1443 = vmul.f32 %v1003, %v1411
        %v1444 = vmul.f32 %v1005, %v1412
        %v1445 = vmul.f32 %v1007, %v1413
        %v1446 = vmul.f32 %v1009, %v1414
        %v1447 = vmul.f32 %v1011, %v1415
        %v1448 = vmul.f32 %v1013, %v1416
        %v1449 = vmul.f32 %v1015, %v1417
        %v1450 = vmul.f32 %v1017, %v1418
        %v1451 = vmul.f32 %v1019, %v1419
        %v1452 = vmul.f32 %v1021, %v1420
        %v1453 = vmul.f32 %v1023, %v1421
        %v1454 = vmul.f32 %v1025, %v1422
        %v1455 = vmul.f32 %v1027, %v1423
        %v1456 = vmul.f32 %v1029, %v1424
        %v1457 = vmul.f32 %v1031, %v1425
        %v1458 = vmul.f32 %v1033, %v1426
        %v1459 = vmul.f32 %v1035, %v1427
        %v1460 = vmul.f32 %v1037, %v1428
        %v1461 = vmul.f32 %v1039, %v1429
        %v1462 = vmul.f32 %v1041, %v1430
        %v1463 = vmul.f32 %v1043, %v1431
        %v1464 = vmul.f32 %v1045, %v1432
        %v1465 = vmul.f32 %v1047, %v1433
        %v1466 = vmul.f32 %v1049, %v1434
        %v1467 = vmul.f32 %v1051, %v1435
        %v1468 = vadd.f32 %v1277, %v1279
        %1469 = vadd.xlane.f32.xlu0 %v1468
        %v1470 = vpop.xlane.xlu0 %1469
        %v1471 = vadd.f32 %v1281, %v1283
        %1472 = vadd.xlane.f32.xlu0 %v1471
        %v1473 = vpop.xlane.xlu0 %1472
        %v1474 = vadd.f32 %v1285, %v1287
        %1475 = vadd.xlane.f32.xlu0 %v1474
        %v1476 = vpop.xlane.xlu0 %1475
        %v1477 = vadd.f32 %v1289, %v1291
        %1478 = vadd.xlane.f32.xlu0 %v1477
        %v1479 = vpop.xlane.xlu0 %1478
        %v1480 = vadd.f32 %v1293, %v1295
        %1481 = vadd.xlane.f32.xlu0 %v1480
        %v1482 = vpop.xlane.xlu0 %1481
        %v1483 = vadd.f32 %v1297, %v1299
        %1484 = vadd.xlane.f32.xlu0 %v1483
        %v1485 = vpop.xlane.xlu0 %1484
        %v1486 = vadd.f32 %v1301, %v1303
        %1487 = vadd.xlane.f32.xlu0 %v1486
        %v1488 = vpop.xlane.xlu0 %1487
        %v1489 = vadd.f32 %v1305, %v1307
        %1490 = vadd.xlane.f32.xlu0 %v1489
        %v1491 = vpop.xlane.xlu0 %1490
        %v1492 = vadd.f32 %v1309, %v1311
        %1493 = vadd.xlane.f32.xlu0 %v1492
        %v1494 = vpop.xlane.xlu0 %1493
        %v1495 = vadd.f32 %v1313, %v1315
        %1496 = vadd.xlane.f32.xlu0 %v1495
        %v1497 = vpop.xlane.xlu0 %1496
        %v1498 = vadd.f32 %v1317, %v1319
        %1499 = vadd.xlane.f32.xlu0 %v1498
        %v1500 = vpop.xlane.xlu0 %1499
        %v1501 = vadd.f32 %v1321, %v1323
        %1502 = vadd.xlane.f32.xlu0 %v1501
        %v1503 = vpop.xlane.xlu0 %1502
        %v1504 = vadd.f32 %v1325, %v1327
        %1505 = vadd.xlane.f32.xlu0 %v1504
        %v1506 = vpop.xlane.xlu0 %1505
        %v1507 = vadd.f32 %v1329, %v1331
        %1508 = vadd.xlane.f32.xlu0 %v1507
        %v1509 = vpop.xlane.xlu0 %1508
        %v1510 = vadd.f32 %v1333, %v1335
        %1511 = vadd.xlane.f32.xlu0 %v1510
        %v1512 = vpop.xlane.xlu0 %1511
        %v1513 = vadd.f32 %v1337, %v1339
        %1514 = vadd.xlane.f32.xlu0 %v1513
        %v1515 = vpop.xlane.xlu0 %1514
        %v1516 = vadd.f32 %v1341, %v1343
        %1517 = vadd.xlane.f32.xlu0 %v1516
        %v1518 = vpop.xlane.xlu0 %1517
        %v1519 = vadd.f32 %v1345, %v1347
        %1520 = vadd.xlane.f32.xlu0 %v1519
        %v1521 = vpop.xlane.xlu0 %1520
        %v1522 = vadd.f32 %v1349, %v1351
        %1523 = vadd.xlane.f32.xlu0 %v1522
        %v1524 = vpop.xlane.xlu0 %1523
        %v1525 = vadd.f32 %v1353, %v1355
        %1526 = vadd.xlane.f32.xlu0 %v1525
        %v1527 = vpop.xlane.xlu0 %1526
        %v1528 = vadd.f32 %v1357, %v1359
        %1529 = vadd.xlane.f32.xlu0 %v1528
        %v1530 = vpop.xlane.xlu0 %1529
        %v1531 = vadd.f32 %v1361, %v1363
        %1532 = vadd.xlane.f32.xlu0 %v1531
        %v1533 = vpop.xlane.xlu0 %1532
        %v1534 = vadd.f32 %v1365, %v1367
        %1535 = vadd.xlane.f32.xlu0 %v1534
        %v1536 = vpop.xlane.xlu0 %1535
        %v1537 = vadd.f32 %v1369, %v1371
        %1538 = vadd.xlane.f32.xlu0 %v1537
        %v1539 = vpop.xlane.xlu0 %1538
        %v1540 = vadd.f32 %v1373, %v1375
        %1541 = vadd.xlane.f32.xlu0 %v1540
        %v1542 = vpop.xlane.xlu0 %1541
        %v1543 = vadd.f32 %v1377, %v1379
        %1544 = vadd.xlane.f32.xlu0 %v1543
        %v1545 = vpop.xlane.xlu0 %1544
        %v1546 = vadd.f32 %v1381, %v1383
        %1547 = vadd.xlane.f32.xlu0 %v1546
        %v1548 = vpop.xlane.xlu0 %1547
        %v1549 = vadd.f32 %v1385, %v1387
        %1550 = vadd.xlane.f32.xlu0 %v1549
        %v1551 = vpop.xlane.xlu0 %1550
        %v1552 = vadd.f32 %v1389, %v1391
        %1553 = vadd.xlane.f32.xlu0 %v1552
        %v1554 = vpop.xlane.xlu0 %1553
        %v1555 = vadd.f32 %v1393, %v1395
        %1556 = vadd.xlane.f32.xlu0 %v1555
        %v1557 = vpop.xlane.xlu0 %1556
        %v1558 = vadd.f32 %v1397, %v1399
        %1559 = vadd.xlane.f32.xlu0 %v1558
        %v1560 = vpop.xlane.xlu0 %1559
        %v1561 = vadd.f32 %v1401, %v1403
        %1562 = vadd.xlane.f32.xlu0 %v1561
        %v1563 = vpop.xlane.xlu0 %1562
        %v1564 = vadd.f32 %v1436, %v1470
        %v1565 = vadd.f32 %v1437, %v1473
        %v1566 = vadd.f32 %v1438, %v1476
        %v1567 = vadd.f32 %v1439, %v1479
        %v1568 = vadd.f32 %v1440, %v1482
        %v1569 = vadd.f32 %v1441, %v1485
        %v1570 = vadd.f32 %v1442, %v1488
        %v1571 = vadd.f32 %v1443, %v1491
        %v1572 = vadd.f32 %v1444, %v1494
        %v1573 = vadd.f32 %v1445, %v1497
        %v1574 = vadd.f32 %v1446, %v1500
        %v1575 = vadd.f32 %v1447, %v1503
        %v1576 = vadd.f32 %v1448, %v1506
        %v1577 = vadd.f32 %v1449, %v1509
        %v1578 = vadd.f32 %v1450, %v1512
        %v1579 = vadd.f32 %v1451, %v1515
        %v1580 = vadd.f32 %v1452, %v1518
        %v1581 = vadd.f32 %v1453, %v1521
        %v1582 = vadd.f32 %v1454, %v1524
        %v1583 = vadd.f32 %v1455, %v1527
        %v1584 = vadd.f32 %v1456, %v1530
        %v1585 = vadd.f32 %v1457, %v1533
        %v1586 = vadd.f32 %v1458, %v1536
        %v1587 = vadd.f32 %v1459, %v1539
        %v1588 = vadd.f32 %v1460, %v1542
        %v1589 = vadd.f32 %v1461, %v1545
        %v1590 = vadd.f32 %v1462, %v1548
        %v1591 = vadd.f32 %v1463, %v1551
        %v1592 = vadd.f32 %v1464, %v1554
        %v1593 = vadd.f32 %v1465, %v1557
        %v1594 = vadd.f32 %v1466, %v1560
        %v1595 = vadd.f32 %v1467, %v1563
        %vm1596 = vcmask 7168
        %1597 = vst.msk [vmem:[#allocation3] sm:$0xff] %vm1596, %v1564
        %1598 = vst.msk [vmem:[#allocation3 + $0x8] sm:$0xff] %vm1596, %v1565
        %1599 = vst.msk [vmem:[#allocation3 + $0x10] sm:$0xff] %vm1596, %v1566
        %1600 = vst.msk [vmem:[#allocation3 + $0x18] sm:$0xff] %vm1596, %v1567
        %1601 = vst.msk [vmem:[#allocation3 + $0x20] sm:$0xff] %vm1596, %v1568
        %1602 = vst.msk [vmem:[#allocation3 + $0x28] sm:$0xff] %vm1596, %v1569
        %1603 = vst.msk [vmem:[#allocation3 + $0x30] sm:$0xff] %vm1596, %v1570
        %1604 = vst.msk [vmem:[#allocation3 + $0x38] sm:$0xff] %vm1596, %v1571
        %1605 = vst.msk [vmem:[#allocation3 + $0x40] sm:$0xff] %vm1596, %v1572
        %1606 = vst.msk [vmem:[#allocation3 + $0x48] sm:$0xff] %vm1596, %v1573
        %1607 = vst.msk [vmem:[#allocation3 + $0x50] sm:$0xff] %vm1596, %v1574
        %1608 = vst.msk [vmem:[#allocation3 + $0x58] sm:$0xff] %vm1596, %v1575
        %1609 = vst.msk [vmem:[#allocation3 + $0x60] sm:$0xff] %vm1596, %v1576
        %1610 = vst.msk [vmem:[#allocation3 + $0x68] sm:$0xff] %vm1596, %v1577
        %1611 = vst.msk [vmem:[#allocation3 + $0x70] sm:$0xff] %vm1596, %v1578
        %1612 = vst.msk [vmem:[#allocation3 + $0x78] sm:$0xff] %vm1596, %v1579
        %1613 = vst.msk [vmem:[#allocation3 + $0x80] sm:$0xff] %vm1596, %v1580
        %1614 = vst.msk [vmem:[#allocation3 + $0x88] sm:$0xff] %vm1596, %v1581
        %1615 = vst.msk [vmem:[#allocation3 + $0x90] sm:$0xff] %vm1596, %v1582
        %1616 = vst.msk [vmem:[#allocation3 + $0x98] sm:$0xff] %vm1596, %v1583
        %1617 = vst.msk [vmem:[#allocation3 + $0xa0] sm:$0xff] %vm1596, %v1584
        %1618 = vst.msk [vmem:[#allocation3 + $0xa8] sm:$0xff] %vm1596, %v1585
        %1619 = vst.msk [vmem:[#allocation3 + $0xb0] sm:$0xff] %vm1596, %v1586
        %1620 = vst.msk [vmem:[#allocation3 + $0xb8] sm:$0xff] %vm1596, %v1587
        %1621 = vst.msk [vmem:[#allocation3 + $0xc0] sm:$0xff] %vm1596, %v1588
        %1622 = vst.msk [vmem:[#allocation3 + $0xc8] sm:$0xff] %vm1596, %v1589
        %1623 = vst.msk [vmem:[#allocation3 + $0xd0] sm:$0xff] %vm1596, %v1590
        %1624 = vst.msk [vmem:[#allocation3 + $0xd8] sm:$0xff] %vm1596, %v1591
        %1625 = vst.msk [vmem:[#allocation3 + $0xe0] sm:$0xff] %vm1596, %v1592
        %1626 = vst.msk [vmem:[#allocation3 + $0xe8] sm:$0xff] %vm1596, %v1593
        %1627 = vst.msk [vmem:[#allocation3 + $0xf0] sm:$0xff] %vm1596, %v1594
        %1628 = vst.msk [vmem:[#allocation3 + $0xf8] sm:$0xff] %vm1596, %v1595
        %v1629 = vld [vmem:[#allocation4] sm:$0xff]
        %v1630 = vld [vmem:[#allocation4 + $0x8] sm:$0xff]
        %v1631 = vld [vmem:[#allocation4 + $0x10] sm:$0xff]
        %v1632 = vld [vmem:[#allocation4 + $0x18] sm:$0xff]
        %v1633 = vld [vmem:[#allocation4 + $0x20] sm:$0xff]
        %v1634 = vld [vmem:[#allocation4 + $0x28] sm:$0xff]
        %v1635 = vld [vmem:[#allocation4 + $0x30] sm:$0xff]
        %v1636 = vld [vmem:[#allocation4 + $0x38] sm:$0xff]
        %v1637 = vld [vmem:[#allocation4 + $0x40] sm:$0xff]
        %v1638 = vld [vmem:[#allocation4 + $0x48] sm:$0xff]
        %v1639 = vld [vmem:[#allocation4 + $0x50] sm:$0xff]
        %v1640 = vld [vmem:[#allocation4 + $0x58] sm:$0xff]
        %v1641 = vld [vmem:[#allocation4 + $0x60] sm:$0xff]
        %v1642 = vld [vmem:[#allocation4 + $0x68] sm:$0xff]
        %v1643 = vld [vmem:[#allocation4 + $0x70] sm:$0xff]
        %v1644 = vld [vmem:[#allocation4 + $0x78] sm:$0xff]
        %v1645 = vld [vmem:[#allocation4 + $0x80] sm:$0xff]
        %v1646 = vld [vmem:[#allocation4 + $0x88] sm:$0xff]
        %v1647 = vld [vmem:[#allocation4 + $0x90] sm:$0xff]
        %v1648 = vld [vmem:[#allocation4 + $0x98] sm:$0xff]
        %v1649 = vld [vmem:[#allocation4 + $0xa0] sm:$0xff]
        %v1650 = vld [vmem:[#allocation4 + $0xa8] sm:$0xff]
        %v1651 = vld [vmem:[#allocation4 + $0xb0] sm:$0xff]
        %v1652 = vld [vmem:[#allocation4 + $0xb8] sm:$0xff]
        %v1653 = vld [vmem:[#allocation4 + $0xc0] sm:$0xff]
        %v1654 = vld [vmem:[#allocation4 + $0xc8] sm:$0xff]
        %v1655 = vld [vmem:[#allocation4 + $0xd0] sm:$0xff]
        %v1656 = vld [vmem:[#allocation4 + $0xd8] sm:$0xff]
        %v1657 = vld [vmem:[#allocation4 + $0xe0] sm:$0xff]
        %v1658 = vld [vmem:[#allocation4 + $0xe8] sm:$0xff]
        %v1659 = vld [vmem:[#allocation4 + $0xf0] sm:$0xff]
        %v1660 = vld [vmem:[#allocation4 + $0xf8] sm:$0xff]
        %1662 = vset.pattern.permute.xlu0 0
        %1663 = vperm.xlu0 %1662, %v989
        %v1664 = vpop.permute.xlu0 %1663
        %1667 = vset.pattern.permute.xlu0 0
        %1668 = vperm.xlu0 %1667, %v991
        %v1669 = vpop.permute.xlu0 %1668
        %1672 = vset.pattern.permute.xlu0 0
        %1673 = vperm.xlu0 %1672, %v993
        %v1674 = vpop.permute.xlu0 %1673
        %1677 = vset.pattern.permute.xlu0 0
        %1678 = vperm.xlu0 %1677, %v995
        %v1679 = vpop.permute.xlu0 %1678
        %1682 = vset.pattern.permute.xlu0 0
        %1683 = vperm.xlu0 %1682, %v997
        %v1684 = vpop.permute.xlu0 %1683
        %1687 = vset.pattern.permute.xlu0 0
        %1688 = vperm.xlu0 %1687, %v999
        %v1689 = vpop.permute.xlu0 %1688
        %1692 = vset.pattern.permute.xlu0 0
        %1693 = vperm.xlu0 %1692, %v1001
        %v1694 = vpop.permute.xlu0 %1693
        %1697 = vset.pattern.permute.xlu0 0
        %1698 = vperm.xlu0 %1697, %v1003
        %v1699 = vpop.permute.xlu0 %1698
        %1702 = vset.pattern.permute.xlu0 0
        %1703 = vperm.xlu0 %1702, %v1005
        %v1704 = vpop.permute.xlu0 %1703
        %1707 = vset.pattern.permute.xlu0 0
        %1708 = vperm.xlu0 %1707, %v1007
        %v1709 = vpop.permute.xlu0 %1708
        %1712 = vset.pattern.permute.xlu0 0
        %1713 = vperm.xlu0 %1712, %v1009
        %v1714 = vpop.permute.xlu0 %1713
        %1717 = vset.pattern.permute.xlu0 0
        %1718 = vperm.xlu0 %1717, %v1011
        %v1719 = vpop.permute.xlu0 %1718
        %1722 = vset.pattern.permute.xlu0 0
        %1723 = vperm.xlu0 %1722, %v1013
        %v1724 = vpop.permute.xlu0 %1723
        %1727 = vset.pattern.permute.xlu0 0
        %1728 = vperm.xlu0 %1727, %v1015
        %v1729 = vpop.permute.xlu0 %1728
        %1732 = vset.pattern.permute.xlu0 0
        %1733 = vperm.xlu0 %1732, %v1017
        %v1734 = vpop.permute.xlu0 %1733
        %1737 = vset.pattern.permute.xlu0 0
        %1738 = vperm.xlu0 %1737, %v1019
        %v1739 = vpop.permute.xlu0 %1738
        %1742 = vset.pattern.permute.xlu0 0
        %1743 = vperm.xlu0 %1742, %v1021
        %v1744 = vpop.permute.xlu0 %1743
        %1747 = vset.pattern.permute.xlu0 0
        %1748 = vperm.xlu0 %1747, %v1023
        %v1749 = vpop.permute.xlu0 %1748
        %1752 = vset.pattern.permute.xlu0 0
        %1753 = vperm.xlu0 %1752, %v1025
        %v1754 = vpop.permute.xlu0 %1753
        %1757 = vset.pattern.permute.xlu0 0
        %1758 = vperm.xlu0 %1757, %v1027
        %v1759 = vpop.permute.xlu0 %1758
        %1762 = vset.pattern.permute.xlu0 0
        %1763 = vperm.xlu0 %1762, %v1029
        %v1764 = vpop.permute.xlu0 %1763
        %1767 = vset.pattern.permute.xlu0 0
        %1768 = vperm.xlu0 %1767, %v1031
        %v1769 = vpop.permute.xlu0 %1768
        %1772 = vset.pattern.permute.xlu0 0
        %1773 = vperm.xlu0 %1772, %v1033
        %v1774 = vpop.permute.xlu0 %1773
        %1777 = vset.pattern.permute.xlu0 0
        %1778 = vperm.xlu0 %1777, %v1035
        %v1779 = vpop.permute.xlu0 %1778
        %1782 = vset.pattern.permute.xlu0 0
        %1783 = vperm.xlu0 %1782, %v1037
        %v1784 = vpop.permute.xlu0 %1783
        %1787 = vset.pattern.permute.xlu0 0
        %1788 = vperm.xlu0 %1787, %v1039
        %v1789 = vpop.permute.xlu0 %1788
        %1792 = vset.pattern.permute.xlu0 0
        %1793 = vperm.xlu0 %1792, %v1041
        %v1794 = vpop.permute.xlu0 %1793
        %1797 = vset.pattern.permute.xlu0 0
        %1798 = vperm.xlu0 %1797, %v1043
        %v1799 = vpop.permute.xlu0 %1798
        %1802 = vset.pattern.permute.xlu0 0
        %1803 = vperm.xlu0 %1802, %v1045
        %v1804 = vpop.permute.xlu0 %1803
        %1807 = vset.pattern.permute.xlu0 0
        %1808 = vperm.xlu0 %1807, %v1047
        %v1809 = vpop.permute.xlu0 %1808
        %1812 = vset.pattern.permute.xlu0 0
        %1813 = vperm.xlu0 %1812, %v1049
        %v1814 = vpop.permute.xlu0 %1813
        %1817 = vset.pattern.permute.xlu0 0
        %1818 = vperm.xlu0 %1817, %v1051
        %v1819 = vpop.permute.xlu0 %1818
        %v1821 = vmul.f32 %v1664, %v1629
        %v1822 = vmul.f32 %v1669, %v1630
        %v1823 = vmul.f32 %v1674, %v1631
        %v1824 = vmul.f32 %v1679, %v1632
        %v1825 = vmul.f32 %v1684, %v1633
        %v1826 = vmul.f32 %v1689, %v1634
        %v1827 = vmul.f32 %v1694, %v1635
        %v1828 = vmul.f32 %v1699, %v1636
        %v1829 = vmul.f32 %v1704, %v1637
        %v1830 = vmul.f32 %v1709, %v1638
        %v1831 = vmul.f32 %v1714, %v1639
        %v1832 = vmul.f32 %v1719, %v1640
        %v1833 = vmul.f32 %v1724, %v1641
        %v1834 = vmul.f32 %v1729, %v1642
        %v1835 = vmul.f32 %v1734, %v1643
        %v1836 = vmul.f32 %v1739, %v1644
        %v1837 = vmul.f32 %v1744, %v1645
        %v1838 = vmul.f32 %v1749, %v1646
        %v1839 = vmul.f32 %v1754, %v1647
        %v1840 = vmul.f32 %v1759, %v1648
        %v1841 = vmul.f32 %v1764, %v1649
        %v1842 = vmul.f32 %v1769, %v1650
        %v1843 = vmul.f32 %v1774, %v1651
        %v1844 = vmul.f32 %v1779, %v1652
        %v1845 = vmul.f32 %v1784, %v1653
        %v1846 = vmul.f32 %v1789, %v1654
        %v1847 = vmul.f32 %v1794, %v1655
        %v1848 = vmul.f32 %v1799, %v1656
        %v1849 = vmul.f32 %v1804, %v1657
        %v1850 = vmul.f32 %v1809, %v1658
        %v1851 = vmul.f32 %v1814, %v1659
        %v1852 = vmul.f32 %v1819, %v1660
        %v1853 = vld [vmem:[%s271] sm:$0xff]
        %v1854 = vld [vmem:[%s271 + $0x8] sm:$0xff]
        %v1855 = vld [vmem:[%s271 + $0x10] sm:$0xff]
        %v1856 = vld [vmem:[%s271 + $0x18] sm:$0xff]
        %v1857 = vld [vmem:[%s271 + $0x20] sm:$0xff]
        %v1858 = vld [vmem:[%s271 + $0x28] sm:$0xff]
        %v1859 = vld [vmem:[%s271 + $0x30] sm:$0xff]
        %v1860 = vld [vmem:[%s271 + $0x38] sm:$0xff]
        %v1861 = vld [vmem:[%s271 + $0x40] sm:$0xff]
        %v1862 = vld [vmem:[%s271 + $0x48] sm:$0xff]
        %v1863 = vld [vmem:[%s271 + $0x50] sm:$0xff]
        %v1864 = vld [vmem:[%s271 + $0x58] sm:$0xff]
        %v1865 = vld [vmem:[%s271 + $0x60] sm:$0xff]
        %v1866 = vld [vmem:[%s271 + $0x68] sm:$0xff]
        %v1867 = vld [vmem:[%s271 + $0x70] sm:$0xff]
        %v1868 = vld [vmem:[%s271 + $0x78] sm:$0xff]
        %v1869 = vld [vmem:[%s271 + $0x80] sm:$0xff]
        %v1870 = vld [vmem:[%s271 + $0x88] sm:$0xff]
        %v1871 = vld [vmem:[%s271 + $0x90] sm:$0xff]
        %v1872 = vld [vmem:[%s271 + $0x98] sm:$0xff]
        %v1873 = vld [vmem:[%s271 + $0xa0] sm:$0xff]
        %v1874 = vld [vmem:[%s271 + $0xa8] sm:$0xff]
        %v1875 = vld [vmem:[%s271 + $0xb0] sm:$0xff]
        %v1876 = vld [vmem:[%s271 + $0xb8] sm:$0xff]
        %v1877 = vld [vmem:[%s271 + $0xc0] sm:$0xff]
        %v1878 = vld [vmem:[%s271 + $0xc8] sm:$0xff]
        %v1879 = vld [vmem:[%s271 + $0xd0] sm:$0xff]
        %v1880 = vld [vmem:[%s271 + $0xd8] sm:$0xff]
        %v1881 = vld [vmem:[%s271 + $0xe0] sm:$0xff]
        %v1882 = vld [vmem:[%s271 + $0xe8] sm:$0xff]
        %v1883 = vld [vmem:[%s271 + $0xf0] sm:$0xff]
        %v1884 = vld [vmem:[%s271 + $0xf8] sm:$0xff]
        %1885 = vmatpush.msra.mxu0 %v1868
        %1886 = vmatpush.msra.mxu0 %v1867
        %1887 = vmatpush.msra.mxu0 %v1866
        %1888 = vmatpush.msra.mxu0 %v1865
        %1889 = vmatpush.msra.mxu0 %v1864
        %1890 = vmatpush.msra.mxu0 %v1863
        %1891 = vmatpush.msra.mxu0 %v1862
        %1892 = vmatpush.msra.mxu0 %v1861
        %1893 = vmatpush.msra.mxu0 %v1860
        %1894 = vmatpush.msra.mxu0 %v1859
        %1895 = vmatpush.msra.mxu0 %v1858
        %1896 = vmatpush.msra.mxu0 %v1857
        %1897 = vmatpush.msra.mxu0 %v1856
        %1898 = vmatpush.msra.mxu0 %v1855
        %1899 = vmatpush.msra.mxu0 %v1854
        %1900 = vmatpush.msra.mxu0 %v1853
        %1901 = vmatmul.f32.gmra.mxu0 %v1277
        %v1902 = vpop.f32.mrf.mxu0
        %v1903 = vadd.f32 0.0, %v1902
        %1904 = vmatmul.f32.gmra.mxu0 %v1281
        %v1905 = vpop.f32.mrf.mxu0
        %v1906 = vadd.f32 0.0, %v1905
        %1907 = vmatmul.f32.gmra.mxu0 %v1285
        %v1908 = vpop.f32.mrf.mxu0
        %v1909 = vadd.f32 0.0, %v1908
        %1910 = vmatmul.f32.gmra.mxu0 %v1289
        %v1911 = vpop.f32.mrf.mxu0
        %v1912 = vadd.f32 0.0, %v1911
        %1913 = vmatmul.f32.gmra.mxu0 %v1293
        %v1914 = vpop.f32.mrf.mxu0
        %v1915 = vadd.f32 0.0, %v1914
        %1916 = vmatmul.f32.gmra.mxu0 %v1297
        %v1917 = vpop.f32.mrf.mxu0
        %v1918 = vadd.f32 0.0, %v1917
        %1919 = vmatmul.f32.gmra.mxu0 %v1301
        %v1920 = vpop.f32.mrf.mxu0
        %v1921 = vadd.f32 0.0, %v1920
        %1922 = vmatmul.f32.gmra.mxu0 %v1305
        %v1923 = vpop.f32.mrf.mxu0
        %v1924 = vadd.f32 0.0, %v1923
        %1925 = vmatmul.f32.gmra.mxu0 %v1309
        %v1926 = vpop.f32.mrf.mxu0
        %v1927 = vadd.f32 0.0, %v1926
        %1928 = vmatmul.f32.gmra.mxu0 %v1313
        %v1929 = vpop.f32.mrf.mxu0
        %v1930 = vadd.f32 0.0, %v1929
        %1931 = vmatmul.f32.gmra.mxu0 %v1317
        %v1932 = vpop.f32.mrf.mxu0
        %v1933 = vadd.f32 0.0, %v1932
        %1934 = vmatmul.f32.gmra.mxu0 %v1321
        %v1935 = vpop.f32.mrf.mxu0
        %v1936 = vadd.f32 0.0, %v1935
        %1937 = vmatmul.f32.gmra.mxu0 %v1325
        %v1938 = vpop.f32.mrf.mxu0
        %v1939 = vadd.f32 0.0, %v1938
        %1940 = vmatmul.f32.gmra.mxu0 %v1329
        %v1941 = vpop.f32.mrf.mxu0
        %v1942 = vadd.f32 0.0, %v1941
        %1943 = vmatmul.f32.gmra.mxu0 %v1333
        %v1944 = vpop.f32.mrf.mxu0
        %v1945 = vadd.f32 0.0, %v1944
        %1946 = vmatmul.f32.gmra.mxu0 %v1337
        %v1947 = vpop.f32.mrf.mxu0
        %v1948 = vadd.f32 0.0, %v1947
        %1949 = vmatmul.f32.gmra.mxu0 %v1341
        %v1950 = vpop.f32.mrf.mxu0
        %v1951 = vadd.f32 0.0, %v1950
        %1952 = vmatmul.f32.gmra.mxu0 %v1345
        %v1953 = vpop.f32.mrf.mxu0
        %v1954 = vadd.f32 0.0, %v1953
        %1955 = vmatmul.f32.gmra.mxu0 %v1349
        %v1956 = vpop.f32.mrf.mxu0
        %v1957 = vadd.f32 0.0, %v1956
        %1958 = vmatmul.f32.gmra.mxu0 %v1353
        %v1959 = vpop.f32.mrf.mxu0
        %v1960 = vadd.f32 0.0, %v1959
        %1961 = vmatmul.f32.gmra.mxu0 %v1357
        %v1962 = vpop.f32.mrf.mxu0
        %v1963 = vadd.f32 0.0, %v1962
        %1964 = vmatmul.f32.gmra.mxu0 %v1361
        %v1965 = vpop.f32.mrf.mxu0
        %v1966 = vadd.f32 0.0, %v1965
        %1967 = vmatmul.f32.gmra.mxu0 %v1365
        %v1968 = vpop.f32.mrf.mxu0
        %v1969 = vadd.f32 0.0, %v1968
        %1970 = vmatmul.f32.gmra.mxu0 %v1369
        %v1971 = vpop.f32.mrf.mxu0
        %v1972 = vadd.f32 0.0, %v1971
        %1973 = vmatmul.f32.gmra.mxu0 %v1373
        %v1974 = vpop.f32.mrf.mxu0
        %v1975 = vadd.f32 0.0, %v1974
        %1976 = vmatmul.f32.gmra.mxu0 %v1377
        %v1977 = vpop.f32.mrf.mxu0
        %v1978 = vadd.f32 0.0, %v1977
        %1979 = vmatmul.f32.gmra.mxu0 %v1381
        %v1980 = vpop.f32.mrf.mxu0
        %v1981 = vadd.f32 0.0, %v1980
        %1982 = vmatmul.f32.gmra.mxu0 %v1385
        %v1983 = vpop.f32.mrf.mxu0
        %v1984 = vadd.f32 0.0, %v1983
        %1985 = vmatmul.f32.gmra.mxu0 %v1389
        %v1986 = vpop.f32.mrf.mxu0
        %v1987 = vadd.f32 0.0, %v1986
        %1988 = vmatmul.f32.gmra.mxu0 %v1393
        %v1989 = vpop.f32.mrf.mxu0
        %v1990 = vadd.f32 0.0, %v1989
        %1991 = vmatmul.f32.gmra.mxu0 %v1397
        %v1992 = vpop.f32.mrf.mxu0
        %v1993 = vadd.f32 0.0, %v1992
        %1994 = vmatmul.f32.gmra.mxu0 %v1401
        %v1995 = vpop.f32.mrf.mxu0
        %v1996 = vadd.f32 0.0, %v1995
        %1997 = vdwg.mxu0
        %1998 = vmatpush.msra.mxu0 %v1884
        %1999 = vmatpush.msra.mxu0 %v1883
        %2000 = vmatpush.msra.mxu0 %v1882
        %2001 = vmatpush.msra.mxu0 %v1881
        %2002 = vmatpush.msra.mxu0 %v1880
        %2003 = vmatpush.msra.mxu0 %v1879
        %2004 = vmatpush.msra.mxu0 %v1878
        %2005 = vmatpush.msra.mxu0 %v1877
        %2006 = vmatpush.msra.mxu0 %v1876
        %2007 = vmatpush.msra.mxu0 %v1875
        %2008 = vmatpush.msra.mxu0 %v1874
        %2009 = vmatpush.msra.mxu0 %v1873
        %2010 = vmatpush.msra.mxu0 %v1872
        %2011 = vmatpush.msra.mxu0 %v1871
        %2012 = vmatpush.msra.mxu0 %v1870
        %2013 = vmatpush.msra.mxu0 %v1869
        %2014 = vmatmul.f32.gmra.mxu0 %v1279
        %v2015 = vpop.f32.mrf.mxu0
        %v2016 = vadd.f32 %v1903, %v2015
        %2017 = vmatmul.f32.gmra.mxu0 %v1283
        %v2018 = vpop.f32.mrf.mxu0
        %v2019 = vadd.f32 %v1906, %v2018
        %2020 = vmatmul.f32.gmra.mxu0 %v1287
        %v2021 = vpop.f32.mrf.mxu0
        %v2022 = vadd.f32 %v1909, %v2021
        %2023 = vmatmul.f32.gmra.mxu0 %v1291
        %v2024 = vpop.f32.mrf.mxu0
        %v2025 = vadd.f32 %v1912, %v2024
        %2026 = vmatmul.f32.gmra.mxu0 %v1295
        %v2027 = vpop.f32.mrf.mxu0
        %v2028 = vadd.f32 %v1915, %v2027
        %2029 = vmatmul.f32.gmra.mxu0 %v1299
        %v2030 = vpop.f32.mrf.mxu0
        %v2031 = vadd.f32 %v1918, %v2030
        %2032 = vmatmul.f32.gmra.mxu0 %v1303
        %v2033 = vpop.f32.mrf.mxu0
        %v2034 = vadd.f32 %v1921, %v2033
        %2035 = vmatmul.f32.gmra.mxu0 %v1307
        %v2036 = vpop.f32.mrf.mxu0
        %v2037 = vadd.f32 %v1924, %v2036
        %2038 = vmatmul.f32.gmra.mxu0 %v1311
        %v2039 = vpop.f32.mrf.mxu0
        %v2040 = vadd.f32 %v1927, %v2039
        %2041 = vmatmul.f32.gmra.mxu0 %v1315
        %v2042 = vpop.f32.mrf.mxu0
        %v2043 = vadd.f32 %v1930, %v2042
        %2044 = vmatmul.f32.gmra.mxu0 %v1319
        %v2045 = vpop.f32.mrf.mxu0
        %v2046 = vadd.f32 %v1933, %v2045
        %2047 = vmatmul.f32.gmra.mxu0 %v1323
        %v2048 = vpop.f32.mrf.mxu0
        %v2049 = vadd.f32 %v1936, %v2048
        %2050 = vmatmul.f32.gmra.mxu0 %v1327
        %v2051 = vpop.f32.mrf.mxu0
        %v2052 = vadd.f32 %v1939, %v2051
        %2053 = vmatmul.f32.gmra.mxu0 %v1331
        %v2054 = vpop.f32.mrf.mxu0
        %v2055 = vadd.f32 %v1942, %v2054
        %2056 = vmatmul.f32.gmra.mxu0 %v1335
        %v2057 = vpop.f32.mrf.mxu0
        %v2058 = vadd.f32 %v1945, %v2057
        %2059 = vmatmul.f32.gmra.mxu0 %v1339
        %v2060 = vpop.f32.mrf.mxu0
        %v2061 = vadd.f32 %v1948, %v2060
        %2062 = vmatmul.f32.gmra.mxu0 %v1343
        %v2063 = vpop.f32.mrf.mxu0
        %v2064 = vadd.f32 %v1951, %v2063
        %2065 = vmatmul.f32.gmra.mxu0 %v1347
        %v2066 = vpop.f32.mrf.mxu0
        %v2067 = vadd.f32 %v1954, %v2066
        %2068 = vmatmul.f32.gmra.mxu0 %v1351
        %v2069 = vpop.f32.mrf.mxu0
        %v2070 = vadd.f32 %v1957, %v2069
        %2071 = vmatmul.f32.gmra.mxu0 %v1355
        %v2072 = vpop.f32.mrf.mxu0
        %v2073 = vadd.f32 %v1960, %v2072
        %2074 = vmatmul.f32.gmra.mxu0 %v1359
        %v2075 = vpop.f32.mrf.mxu0
        %v2076 = vadd.f32 %v1963, %v2075
        %2077 = vmatmul.f32.gmra.mxu0 %v1363
        %v2078 = vpop.f32.mrf.mxu0
        %v2079 = vadd.f32 %v1966, %v2078
        %2080 = vmatmul.f32.gmra.mxu0 %v1367
        %v2081 = vpop.f32.mrf.mxu0
        %v2082 = vadd.f32 %v1969, %v2081
        %2083 = vmatmul.f32.gmra.mxu0 %v1371
        %v2084 = vpop.f32.mrf.mxu0
        %v2085 = vadd.f32 %v1972, %v2084
        %2086 = vmatmul.f32.gmra.mxu0 %v1375
        %v2087 = vpop.f32.mrf.mxu0
        %v2088 = vadd.f32 %v1975, %v2087
        %2089 = vmatmul.f32.gmra.mxu0 %v1379
        %v2090 = vpop.f32.mrf.mxu0
        %v2091 = vadd.f32 %v1978, %v2090
        %2092 = vmatmul.f32.gmra.mxu0 %v1383
        %v2093 = vpop.f32.mrf.mxu0
        %v2094 = vadd.f32 %v1981, %v2093
        %2095 = vmatmul.f32.gmra.mxu0 %v1387
        %v2096 = vpop.f32.mrf.mxu0
        %v2097 = vadd.f32 %v1984, %v2096
        %2098 = vmatmul.f32.gmra.mxu0 %v1391
        %v2099 = vpop.f32.mrf.mxu0
        %v2100 = vadd.f32 %v1987, %v2099
        %2101 = vmatmul.f32.gmra.mxu0 %v1395
        %v2102 = vpop.f32.mrf.mxu0
        %v2103 = vadd.f32 %v1990, %v2102
        %2104 = vmatmul.f32.gmra.mxu0 %v1399
        %v2105 = vpop.f32.mrf.mxu0
        %v2106 = vadd.f32 %v1993, %v2105
        %2107 = vmatmul.f32.gmra.mxu0 %v1403
        %v2108 = vpop.f32.mrf.mxu0
        %v2109 = vadd.f32 %v1996, %v2108
        %2110 = vdwg.mxu0
        %v2111 = vadd.f32 %v1821, %v2016
        %v2112 = vadd.f32 %v1822, %v2019
        %v2113 = vadd.f32 %v1823, %v2022
        %v2114 = vadd.f32 %v1824, %v2025
        %v2115 = vadd.f32 %v1825, %v2028
        %v2116 = vadd.f32 %v1826, %v2031
        %v2117 = vadd.f32 %v1827, %v2034
        %v2118 = vadd.f32 %v1828, %v2037
        %v2119 = vadd.f32 %v1829, %v2040
        %v2120 = vadd.f32 %v1830, %v2043
        %v2121 = vadd.f32 %v1831, %v2046
        %v2122 = vadd.f32 %v1832, %v2049
        %v2123 = vadd.f32 %v1833, %v2052
        %v2124 = vadd.f32 %v1834, %v2055
        %v2125 = vadd.f32 %v1835, %v2058
        %v2126 = vadd.f32 %v1836, %v2061
        %v2127 = vadd.f32 %v1837, %v2064
        %v2128 = vadd.f32 %v1838, %v2067
        %v2129 = vadd.f32 %v1839, %v2070
        %v2130 = vadd.f32 %v1840, %v2073
        %v2131 = vadd.f32 %v1841, %v2076
        %v2132 = vadd.f32 %v1842, %v2079
        %v2133 = vadd.f32 %v1843, %v2082
        %v2134 = vadd.f32 %v1844, %v2085
        %v2135 = vadd.f32 %v1845, %v2088
        %v2136 = vadd.f32 %v1846, %v2091
        %v2137 = vadd.f32 %v1847, %v2094
        %v2138 = vadd.f32 %v1848, %v2097
        %v2139 = vadd.f32 %v1849, %v2100
        %v2140 = vadd.f32 %v1850, %v2103
        %v2141 = vadd.f32 %v1851, %v2106
        %v2142 = vadd.f32 %v1852, %v2109
        %2143 = vst [vmem:[#allocation4] sm:$0xff] %v2111
        %2144 = vst [vmem:[#allocation4 + $0x8] sm:$0xff] %v2112
        %2145 = vst [vmem:[#allocation4 + $0x10] sm:$0xff] %v2113
        %2146 = vst [vmem:[#allocation4 + $0x18] sm:$0xff] %v2114
        %2147 = vst [vmem:[#allocation4 + $0x20] sm:$0xff] %v2115
        %2148 = vst [vmem:[#allocation4 + $0x28] sm:$0xff] %v2116
        %2149 = vst [vmem:[#allocation4 + $0x30] sm:$0xff] %v2117
        %2150 = vst [vmem:[#allocation4 + $0x38] sm:$0xff] %v2118
        %2151 = vst [vmem:[#allocation4 + $0x40] sm:$0xff] %v2119
        %2152 = vst [vmem:[#allocation4 + $0x48] sm:$0xff] %v2120
        %2153 = vst [vmem:[#allocation4 + $0x50] sm:$0xff] %v2121
        %2154 = vst [vmem:[#allocation4 + $0x58] sm:$0xff] %v2122
        %2155 = vst [vmem:[#allocation4 + $0x60] sm:$0xff] %v2123
        %2156 = vst [vmem:[#allocation4 + $0x68] sm:$0xff] %v2124
        %2157 = vst [vmem:[#allocation4 + $0x70] sm:$0xff] %v2125
        %2158 = vst [vmem:[#allocation4 + $0x78] sm:$0xff] %v2126
        %2159 = vst [vmem:[#allocation4 + $0x80] sm:$0xff] %v2127
        %2160 = vst [vmem:[#allocation4 + $0x88] sm:$0xff] %v2128
        %2161 = vst [vmem:[#allocation4 + $0x90] sm:$0xff] %v2129
        %2162 = vst [vmem:[#allocation4 + $0x98] sm:$0xff] %v2130
        %2163 = vst [vmem:[#allocation4 + $0xa0] sm:$0xff] %v2131
        %2164 = vst [vmem:[#allocation4 + $0xa8] sm:$0xff] %v2132
        %2165 = vst [vmem:[#allocation4 + $0xb0] sm:$0xff] %v2133
        %2166 = vst [vmem:[#allocation4 + $0xb8] sm:$0xff] %v2134
        %2167 = vst [vmem:[#allocation4 + $0xc0] sm:$0xff] %v2135
        %2168 = vst [vmem:[#allocation4 + $0xc8] sm:$0xff] %v2136
        %2169 = vst [vmem:[#allocation4 + $0xd0] sm:$0xff] %v2137
        %2170 = vst [vmem:[#allocation4 + $0xd8] sm:$0xff] %v2138
        %2171 = vst [vmem:[#allocation4 + $0xe0] sm:$0xff] %v2139
        %2172 = vst [vmem:[#allocation4 + $0xe8] sm:$0xff] %v2140
        %2173 = vst [vmem:[#allocation4 + $0xf0] sm:$0xff] %v2141
        %2174 = vst [vmem:[#allocation4 + $0xf8] sm:$0xff] %v2142
        %2175 = vst.msk [vmem:[#allocation2] sm:$0xff] %vm1596, %v924
        %2176 = vst.msk [vmem:[#allocation2 + $0x8] sm:$0xff] %vm1596, %v925
        %2177 = vst.msk [vmem:[#allocation2 + $0x10] sm:$0xff] %vm1596, %v926
        %2178 = vst.msk [vmem:[#allocation2 + $0x18] sm:$0xff] %vm1596, %v927
        %2179 = vst.msk [vmem:[#allocation2 + $0x20] sm:$0xff] %vm1596, %v928
        %2180 = vst.msk [vmem:[#allocation2 + $0x28] sm:$0xff] %vm1596, %v929
        %2181 = vst.msk [vmem:[#allocation2 + $0x30] sm:$0xff] %vm1596, %v930
        %2182 = vst.msk [vmem:[#allocation2 + $0x38] sm:$0xff] %vm1596, %v931
        %2183 = vst.msk [vmem:[#allocation2 + $0x40] sm:$0xff] %vm1596, %v932
        %2184 = vst.msk [vmem:[#allocation2 + $0x48] sm:$0xff] %vm1596, %v933
        %2185 = vst.msk [vmem:[#allocation2 + $0x50] sm:$0xff] %vm1596, %v934
        %2186 = vst.msk [vmem:[#allocation2 + $0x58] sm:$0xff] %vm1596, %v935
        %2187 = vst.msk [vmem:[#allocation2 + $0x60] sm:$0xff] %vm1596, %v936
        %2188 = vst.msk [vmem:[#allocation2 + $0x68] sm:$0xff] %vm1596, %v937
        %2189 = vst.msk [vmem:[#allocation2 + $0x70] sm:$0xff] %vm1596, %v938
        %2190 = vst.msk [vmem:[#allocation2 + $0x78] sm:$0xff] %vm1596, %v939
        %2191 = vst.msk [vmem:[#allocation2 + $0x80] sm:$0xff] %vm1596, %v940
        %2192 = vst.msk [vmem:[#allocation2 + $0x88] sm:$0xff] %vm1596, %v941
        %2193 = vst.msk [vmem:[#allocation2 + $0x90] sm:$0xff] %vm1596, %v942
        %2194 = vst.msk [vmem:[#allocation2 + $0x98] sm:$0xff] %vm1596, %v943
        %2195 = vst.msk [vmem:[#allocation2 + $0xa0] sm:$0xff] %vm1596, %v944
        %2196 = vst.msk [vmem:[#allocation2 + $0xa8] sm:$0xff] %vm1596, %v945
        %2197 = vst.msk [vmem:[#allocation2 + $0xb0] sm:$0xff] %vm1596, %v946
        %2198 = vst.msk [vmem:[#allocation2 + $0xb8] sm:$0xff] %vm1596, %v947
        %2199 = vst.msk [vmem:[#allocation2 + $0xc0] sm:$0xff] %vm1596, %v948
        %2200 = vst.msk [vmem:[#allocation2 + $0xc8] sm:$0xff] %vm1596, %v949
        %2201 = vst.msk [vmem:[#allocation2 + $0xd0] sm:$0xff] %vm1596, %v950
        %2202 = vst.msk [vmem:[#allocation2 + $0xd8] sm:$0xff] %vm1596, %v951
        %2203 = vst.msk [vmem:[#allocation2 + $0xe0] sm:$0xff] %vm1596, %v952
        %2204 = vst.msk [vmem:[#allocation2 + $0xe8] sm:$0xff] %vm1596, %v953
        %2205 = vst.msk [vmem:[#allocation2 + $0xf0] sm:$0xff] %vm1596, %v954
        %2206 = vst.msk [vmem:[#allocation2 + $0xf8] sm:$0xff] %vm1596, %v955
        // Predicated region
        $region49: #{tpu_custom_call.1} parent=31 // pred_check
          %p2207 = pneg %p309
        $region50: #{tpu_custom_call.1} parent=31 // pred_check_branch
          %2209 = sbr.rel (%p2207) target = $region52
        $region51: #{tpu_custom_call.1} parent=31 // pred_region
          %v2210 = vld [vmem:[#allocation3] sm:$0xff]
          %v2211 = vld [vmem:[#allocation3 + $0x8] sm:$0xff]
          %v2212 = vld [vmem:[#allocation3 + $0x10] sm:$0xff]
          %v2213 = vld [vmem:[#allocation3 + $0x18] sm:$0xff]
          %v2214 = vld [vmem:[#allocation3 + $0x20] sm:$0xff]
          %v2215 = vld [vmem:[#allocation3 + $0x28] sm:$0xff]
          %v2216 = vld [vmem:[#allocation3 + $0x30] sm:$0xff]
          %v2217 = vld [vmem:[#allocation3 + $0x38] sm:$0xff]
          %v2218 = vld [vmem:[#allocation3 + $0x40] sm:$0xff]
          %v2219 = vld [vmem:[#allocation3 + $0x48] sm:$0xff]
          %v2220 = vld [vmem:[#allocation3 + $0x50] sm:$0xff]
          %v2221 = vld [vmem:[#allocation3 + $0x58] sm:$0xff]
          %v2222 = vld [vmem:[#allocation3 + $0x60] sm:$0xff]
          %v2223 = vld [vmem:[#allocation3 + $0x68] sm:$0xff]
          %v2224 = vld [vmem:[#allocation3 + $0x70] sm:$0xff]
          %v2225 = vld [vmem:[#allocation3 + $0x78] sm:$0xff]
          %v2226 = vld [vmem:[#allocation3 + $0x80] sm:$0xff]
          %v2227 = vld [vmem:[#allocation3 + $0x88] sm:$0xff]
          %v2228 = vld [vmem:[#allocation3 + $0x90] sm:$0xff]
          %v2229 = vld [vmem:[#allocation3 + $0x98] sm:$0xff]
          %v2230 = vld [vmem:[#allocation3 + $0xa0] sm:$0xff]
          %v2231 = vld [vmem:[#allocation3 + $0xa8] sm:$0xff]
          %v2232 = vld [vmem:[#allocation3 + $0xb0] sm:$0xff]
          %v2233 = vld [vmem:[#allocation3 + $0xb8] sm:$0xff]
          %v2234 = vld [vmem:[#allocation3 + $0xc0] sm:$0xff]
          %v2235 = vld [vmem:[#allocation3 + $0xc8] sm:$0xff]
          %v2236 = vld [vmem:[#allocation3 + $0xd0] sm:$0xff]
          %v2237 = vld [vmem:[#allocation3 + $0xd8] sm:$0xff]
          %v2238 = vld [vmem:[#allocation3 + $0xe0] sm:$0xff]
          %v2239 = vld [vmem:[#allocation3 + $0xe8] sm:$0xff]
          %v2240 = vld [vmem:[#allocation3 + $0xf0] sm:$0xff]
          %v2241 = vld [vmem:[#allocation3 + $0xf8] sm:$0xff]
          %v2242 = vrcp.pop %v2210
          %v2243 = vrcp.pop %v2211
          %v2244 = vrcp.pop %v2212
          %v2245 = vrcp.pop %v2213
          %v2246 = vrcp.pop %v2214
          %v2247 = vrcp.pop %v2215
          %v2248 = vrcp.pop %v2216
          %v2249 = vrcp.pop %v2217
          %v2250 = vrcp.pop %v2218
          %v2251 = vrcp.pop %v2219
          %v2252 = vrcp.pop %v2220
          %v2253 = vrcp.pop %v2221
          %v2254 = vrcp.pop %v2222
          %v2255 = vrcp.pop %v2223
          %v2256 = vrcp.pop %v2224
          %v2257 = vrcp.pop %v2225
          %v2258 = vrcp.pop %v2226
          %v2259 = vrcp.pop %v2227
          %v2260 = vrcp.pop %v2228
          %v2261 = vrcp.pop %v2229
          %v2262 = vrcp.pop %v2230
          %v2263 = vrcp.pop %v2231
          %v2264 = vrcp.pop %v2232
          %v2265 = vrcp.pop %v2233
          %v2266 = vrcp.pop %v2234
          %v2267 = vrcp.pop %v2235
          %v2268 = vrcp.pop %v2236
          %v2269 = vrcp.pop %v2237
          %v2270 = vrcp.pop %v2238
          %v2271 = vrcp.pop %v2239
          %v2272 = vrcp.pop %v2240
          %v2273 = vrcp.pop %v2241
          %v2274 = vld [vmem:[#allocation4] sm:$0xff]
          %v2275 = vld [vmem:[#allocation4 + $0x8] sm:$0xff]
          %v2276 = vld [vmem:[#allocation4 + $0x10] sm:$0xff]
          %v2277 = vld [vmem:[#allocation4 + $0x18] sm:$0xff]
          %v2278 = vld [vmem:[#allocation4 + $0x20] sm:$0xff]
          %v2279 = vld [vmem:[#allocation4 + $0x28] sm:$0xff]
          %v2280 = vld [vmem:[#allocation4 + $0x30] sm:$0xff]
          %v2281 = vld [vmem:[#allocation4 + $0x38] sm:$0xff]
          %v2282 = vld [vmem:[#allocation4 + $0x40] sm:$0xff]
          %v2283 = vld [vmem:[#allocation4 + $0x48] sm:$0xff]
          %v2284 = vld [vmem:[#allocation4 + $0x50] sm:$0xff]
          %v2285 = vld [vmem:[#allocation4 + $0x58] sm:$0xff]
          %v2286 = vld [vmem:[#allocation4 + $0x60] sm:$0xff]
          %v2287 = vld [vmem:[#allocation4 + $0x68] sm:$0xff]
          %v2288 = vld [vmem:[#allocation4 + $0x70] sm:$0xff]
          %v2289 = vld [vmem:[#allocation4 + $0x78] sm:$0xff]
          %v2290 = vld [vmem:[#allocation4 + $0x80] sm:$0xff]
          %v2291 = vld [vmem:[#allocation4 + $0x88] sm:$0xff]
          %v2292 = vld [vmem:[#allocation4 + $0x90] sm:$0xff]
          %v2293 = vld [vmem:[#allocation4 + $0x98] sm:$0xff]
          %v2294 = vld [vmem:[#allocation4 + $0xa0] sm:$0xff]
          %v2295 = vld [vmem:[#allocation4 + $0xa8] sm:$0xff]
          %v2296 = vld [vmem:[#allocation4 + $0xb0] sm:$0xff]
          %v2297 = vld [vmem:[#allocation4 + $0xb8] sm:$0xff]
          %v2298 = vld [vmem:[#allocation4 + $0xc0] sm:$0xff]
          %v2299 = vld [vmem:[#allocation4 + $0xc8] sm:$0xff]
          %v2300 = vld [vmem:[#allocation4 + $0xd0] sm:$0xff]
          %v2301 = vld [vmem:[#allocation4 + $0xd8] sm:$0xff]
          %v2302 = vld [vmem:[#allocation4 + $0xe0] sm:$0xff]
          %v2303 = vld [vmem:[#allocation4 + $0xe8] sm:$0xff]
          %v2304 = vld [vmem:[#allocation4 + $0xf0] sm:$0xff]
          %v2305 = vld [vmem:[#allocation4 + $0xf8] sm:$0xff]
          %2307 = vset.pattern.permute.xlu0 0
          %2308 = vperm.xlu0 %2307, %v2242
          %v2309 = vpop.permute.xlu0 %2308
          %2312 = vset.pattern.permute.xlu0 0
          %2313 = vperm.xlu0 %2312, %v2243
          %v2314 = vpop.permute.xlu0 %2313
          %2317 = vset.pattern.permute.xlu0 0
          %2318 = vperm.xlu0 %2317, %v2244
          %v2319 = vpop.permute.xlu0 %2318
          %2322 = vset.pattern.permute.xlu0 0
          %2323 = vperm.xlu0 %2322, %v2245
          %v2324 = vpop.permute.xlu0 %2323
          %2327 = vset.pattern.permute.xlu0 0
          %2328 = vperm.xlu0 %2327, %v2246
          %v2329 = vpop.permute.xlu0 %2328
          %2332 = vset.pattern.permute.xlu0 0
          %2333 = vperm.xlu0 %2332, %v2247
          %v2334 = vpop.permute.xlu0 %2333
          %2337 = vset.pattern.permute.xlu0 0
          %2338 = vperm.xlu0 %2337, %v2248
          %v2339 = vpop.permute.xlu0 %2338
          %2342 = vset.pattern.permute.xlu0 0
          %2343 = vperm.xlu0 %2342, %v2249
          %v2344 = vpop.permute.xlu0 %2343
          %2347 = vset.pattern.permute.xlu0 0
          %2348 = vperm.xlu0 %2347, %v2250
          %v2349 = vpop.permute.xlu0 %2348
          %2352 = vset.pattern.permute.xlu0 0
          %2353 = vperm.xlu0 %2352, %v2251
          %v2354 = vpop.permute.xlu0 %2353
          %2357 = vset.pattern.permute.xlu0 0
          %2358 = vperm.xlu0 %2357, %v2252
          %v2359 = vpop.permute.xlu0 %2358
          %2362 = vset.pattern.permute.xlu0 0
          %2363 = vperm.xlu0 %2362, %v2253
          %v2364 = vpop.permute.xlu0 %2363
          %2367 = vset.pattern.permute.xlu0 0
          %2368 = vperm.xlu0 %2367, %v2254
          %v2369 = vpop.permute.xlu0 %2368
          %2372 = vset.pattern.permute.xlu0 0
          %2373 = vperm.xlu0 %2372, %v2255
          %v2374 = vpop.permute.xlu0 %2373
          %2377 = vset.pattern.permute.xlu0 0
          %2378 = vperm.xlu0 %2377, %v2256
          %v2379 = vpop.permute.xlu0 %2378
          %2382 = vset.pattern.permute.xlu0 0
          %2383 = vperm.xlu0 %2382, %v2257
          %v2384 = vpop.permute.xlu0 %2383
          %2387 = vset.pattern.permute.xlu0 0
          %2388 = vperm.xlu0 %2387, %v2258
          %v2389 = vpop.permute.xlu0 %2388
          %2392 = vset.pattern.permute.xlu0 0
          %2393 = vperm.xlu0 %2392, %v2259
          %v2394 = vpop.permute.xlu0 %2393
          %2397 = vset.pattern.permute.xlu0 0
          %2398 = vperm.xlu0 %2397, %v2260
          %v2399 = vpop.permute.xlu0 %2398
          %2402 = vset.pattern.permute.xlu0 0
          %2403 = vperm.xlu0 %2402, %v2261
          %v2404 = vpop.permute.xlu0 %2403
          %2407 = vset.pattern.permute.xlu0 0
          %2408 = vperm.xlu0 %2407, %v2262
          %v2409 = vpop.permute.xlu0 %2408
          %2412 = vset.pattern.permute.xlu0 0
          %2413 = vperm.xlu0 %2412, %v2263
          %v2414 = vpop.permute.xlu0 %2413
          %2417 = vset.pattern.permute.xlu0 0
          %2418 = vperm.xlu0 %2417, %v2264
          %v2419 = vpop.permute.xlu0 %2418
          %2422 = vset.pattern.permute.xlu0 0
          %2423 = vperm.xlu0 %2422, %v2265
          %v2424 = vpop.permute.xlu0 %2423
          %2427 = vset.pattern.permute.xlu0 0
          %2428 = vperm.xlu0 %2427, %v2266
          %v2429 = vpop.permute.xlu0 %2428
          %2432 = vset.pattern.permute.xlu0 0
          %2433 = vperm.xlu0 %2432, %v2267
          %v2434 = vpop.permute.xlu0 %2433
          %2437 = vset.pattern.permute.xlu0 0
          %2438 = vperm.xlu0 %2437, %v2268
          %v2439 = vpop.permute.xlu0 %2438
          %2442 = vset.pattern.permute.xlu0 0
          %2443 = vperm.xlu0 %2442, %v2269
          %v2444 = vpop.permute.xlu0 %2443
          %2447 = vset.pattern.permute.xlu0 0
          %2448 = vperm.xlu0 %2447, %v2270
          %v2449 = vpop.permute.xlu0 %2448
          %2452 = vset.pattern.permute.xlu0 0
          %2453 = vperm.xlu0 %2452, %v2271
          %v2454 = vpop.permute.xlu0 %2453
          %2457 = vset.pattern.permute.xlu0 0
          %2458 = vperm.xlu0 %2457, %v2272
          %v2459 = vpop.permute.xlu0 %2458
          %2462 = vset.pattern.permute.xlu0 0
          %2463 = vperm.xlu0 %2462, %v2273
          %v2464 = vpop.permute.xlu0 %2463
          %v2466 = vmul.f32 %v2274, %v2309
          %v2467 = vmul.f32 %v2275, %v2314
          %v2468 = vmul.f32 %v2276, %v2319
          %v2469 = vmul.f32 %v2277, %v2324
          %v2470 = vmul.f32 %v2278, %v2329
          %v2471 = vmul.f32 %v2279, %v2334
          %v2472 = vmul.f32 %v2280, %v2339
          %v2473 = vmul.f32 %v2281, %v2344
          %v2474 = vmul.f32 %v2282, %v2349
          %v2475 = vmul.f32 %v2283, %v2354
          %v2476 = vmul.f32 %v2284, %v2359
          %v2477 = vmul.f32 %v2285, %v2364
          %v2478 = vmul.f32 %v2286, %v2369
          %v2479 = vmul.f32 %v2287, %v2374
          %v2480 = vmul.f32 %v2288, %v2379
          %v2481 = vmul.f32 %v2289, %v2384
          %v2482 = vmul.f32 %v2290, %v2389
          %v2483 = vmul.f32 %v2291, %v2394
          %v2484 = vmul.f32 %v2292, %v2399
          %v2485 = vmul.f32 %v2293, %v2404
          %v2486 = vmul.f32 %v2294, %v2409
          %v2487 = vmul.f32 %v2295, %v2414
          %v2488 = vmul.f32 %v2296, %v2419
          %v2489 = vmul.f32 %v2297, %v2424
          %v2490 = vmul.f32 %v2298, %v2429
          %v2491 = vmul.f32 %v2299, %v2434
          %v2492 = vmul.f32 %v2300, %v2439
          %v2493 = vmul.f32 %v2301, %v2444
          %v2494 = vmul.f32 %v2302, %v2449
          %v2495 = vmul.f32 %v2303, %v2454
          %v2496 = vmul.f32 %v2304, %v2459
          %v2497 = vmul.f32 %v2305, %v2464
          %2498 = vst [vmem:[%s304] sm:$0xff] %v2466
          %2499 = vst [vmem:[%s304 + $0x8] sm:$0xff] %v2467
          %2500 = vst [vmem:[%s304 + $0x10] sm:$0xff] %v2468
          %2501 = vst [vmem:[%s304 + $0x18] sm:$0xff] %v2469
          %2502 = vst [vmem:[%s304 + $0x20] sm:$0xff] %v2470
          %2503 = vst [vmem:[%s304 + $0x28] sm:$0xff] %v2471
          %2504 = vst [vmem:[%s304 + $0x30] sm:$0xff] %v2472
          %2505 = vst [vmem:[%s304 + $0x38] sm:$0xff] %v2473
          %2506 = vst [vmem:[%s304 + $0x40] sm:$0xff] %v2474
          %2507 = vst [vmem:[%s304 + $0x48] sm:$0xff] %v2475
          %2508 = vst [vmem:[%s304 + $0x50] sm:$0xff] %v2476
          %2509 = vst [vmem:[%s304 + $0x58] sm:$0xff] %v2477
          %2510 = vst [vmem:[%s304 + $0x60] sm:$0xff] %v2478
          %2511 = vst [vmem:[%s304 + $0x68] sm:$0xff] %v2479
          %2512 = vst [vmem:[%s304 + $0x70] sm:$0xff] %v2480
          %2513 = vst [vmem:[%s304 + $0x78] sm:$0xff] %v2481
          %2514 = vst [vmem:[%s304 + $0x80] sm:$0xff] %v2482
          %2515 = vst [vmem:[%s304 + $0x88] sm:$0xff] %v2483
          %2516 = vst [vmem:[%s304 + $0x90] sm:$0xff] %v2484
          %2517 = vst [vmem:[%s304 + $0x98] sm:$0xff] %v2485
          %2518 = vst [vmem:[%s304 + $0xa0] sm:$0xff] %v2486
          %2519 = vst [vmem:[%s304 + $0xa8] sm:$0xff] %v2487
          %2520 = vst [vmem:[%s304 + $0xb0] sm:$0xff] %v2488
          %2521 = vst [vmem:[%s304 + $0xb8] sm:$0xff] %v2489
          %2522 = vst [vmem:[%s304 + $0xc0] sm:$0xff] %v2490
          %2523 = vst [vmem:[%s304 + $0xc8] sm:$0xff] %v2491
          %2524 = vst [vmem:[%s304 + $0xd0] sm:$0xff] %v2492
          %2525 = vst [vmem:[%s304 + $0xd8] sm:$0xff] %v2493
          %2526 = vst [vmem:[%s304 + $0xe0] sm:$0xff] %v2494
          %2527 = vst [vmem:[%s304 + $0xe8] sm:$0xff] %v2495
          %2528 = vst [vmem:[%s304 + $0xf0] sm:$0xff] %v2496
          %2529 = vst [vmem:[%s304 + $0xf8] sm:$0xff] %v2497
        $region52: #{tpu_custom_call.1} parent=31 // pred_fallthru
          _
        %s2530 = sand.u32 %s136, 1
        %s2531 = scalar_lea.sflag [#allocation8], %s2530
        %s2532 = sand.u32 %s136, 1
        %s2533 = smul.addr %s2532, 256
        %s2534 = scalar_lea.vmem [#allocation12], %s2533
        // Predicated region
        $region53: #{tpu_custom_call.1} parent=31 // pred_check
          %p2535 = pneg %p146
        $region54: #{tpu_custom_call.1} parent=31 // pred_check_branch
          %2537 = sbr.rel (%p2535) target = $region56
        $region55: #{tpu_custom_call.1} parent=31 // pred_region
          %s2538 = smul.u32 32, %s29
          %2540 = vsyncadd %s2531, 0
          %s2541 = smul.addr %s28, 32
          %s2542 = sadd.s32 %s2538, %s2541
          %s2543 = smul.addr %s2542, 8
          %s2544 = scalar_lea.hbm %s3, %s2543
          %s2545 = sshll.u32 %s2534, 4
          %s2546 = int_to_ptr.vmem [resolvable:$true] %s2545
          %s2547 = sshll.u32 %s2544, 4
          %s2548 = int_to_ptr.hbm [resolvable:$true] %s2547
          %2553 = dma.vmem_to_hbm [thread:$0]  %s2546, 4096, %s2548, %s2531, 128, 128, 8
        $region56: #{tpu_custom_call.1} parent=31 // pred_fallthru
          _
      $region32: #{tpu_custom_call.1} parent=5 // pred_fallthru
        _
      %p2554 = scmp.le.s32.totalorder 2, %s18
      // Predicated region
      $region57: #{tpu_custom_call.1} parent=5 // pred_check
        %p2555 = pneg %p2554
      $region58: #{tpu_custom_call.1} parent=5 // pred_check_branch
        %2557 = sbr.rel (%p2555) target = $region60
      $region59: #{tpu_custom_call.1} parent=5 // pred_region
        %s2558 = ssub.s32 %s18, 2
        // Predicated region
        $region61: #{tpu_custom_call.1} parent=59 // pred_check
          %p2559 = pneg %p152
        $region62: #{tpu_custom_call.1} parent=59 // pred_check_branch
          %2561 = sbr.rel (%p2559) target = $region64
        $region63: #{tpu_custom_call.1} parent=59 // pred_region
          %s2562 = sand.u32 %s137, 1
          %s2563 = scalar_lea.sflag [#allocation8], %s2562
          %s2564 = sand.u32 %s137, 1
          %s2565 = smul.addr %s2564, 256
          %s2566 = scalar_lea.vmem [#allocation12], %s2565
          %2568 = dma.done %s2563, 4096
        $region64: #{tpu_custom_call.1} parent=59 // pred_fallthru
          _
      $region60: #{tpu_custom_call.1} parent=5 // pred_fallthru
        _
    $region6: #{tpu_custom_call.1} parent=1 // loop_footer
      %s22 = sadd.s32 1, %s18
    $region7: #{tpu_custom_call.1} parent=1 // loop_footer_branch
      %17 = sbr.rel target = $region3
    $region8: #{tpu_custom_call.1} parent=1 // loop_exit
      _
    %2569 = vsyncpa [#allocation7], 1
    %s2570 = scalar_lea.sflag [#allocation7], 1
    %2571 = vsyncpa %s2570, 1
    %2572 = vsyncpa [#allocation10], 1
    %s2573 = scalar_lea.sflag [#allocation10], 1
    %2574 = vsyncpa %s2573, 1
    %2575 = vsyncpa [#allocation8], 1
    %s2576 = scalar_lea.sflag [#allocation8], 1
    %2577 = vsyncpa %s2576, 1

</llo_original>
